<compile_context>
chip_gen: v5e
topology: v5e:2x2
jax: 0.10.0
libtpu: 0.0.40
codegen_flags: <defaults>
</compile_context>

<pallas_src>
import functools

import jax
import jax.numpy as jnp
from jax import lax
from jax.experimental import pallas as pl
from jax.experimental.pallas import tpu as pltpu


# ----------------------------------------------------------------------------
# Fused MHA kernel (one batch element per grid step)
# ----------------------------------------------------------------------------
def _mha_fused_kernel(
    xq_ref, xk_ref, xv_ref,
    wqkv_ref, bqkv_ref, wo_ref, bo_ref,
    out_ref, attn_ref,
    *, num_head, d_k,
):
    seq = xq_ref.shape[1]
    model_dim = num_head * d_k

    # --- fused QKV projection (bf16 MXU operands, f32 accumulation) ---------
    # torch.nn.Linear: y = x @ W.T + b, W is (out, in).  The three projection
    # weights are stacked on a leading axis -> one batched MXU contraction.
    x3 = jnp.stack(
        [xq_ref[0].astype(jnp.bfloat16),
         xk_ref[0].astype(jnp.bfloat16),
         xv_ref[0].astype(jnp.bfloat16)], axis=0)            # (3, seq, D) bf16
    qkv = lax.dot_general(
        x3, wqkv_ref[...],
        dimension_numbers=(((2,), (2,)), ((0,), (0,))),       # contract in_features
        preferred_element_type=jnp.float32)                   # (3, seq, D) f32
    qkv = qkv + bqkv_ref[...]                                 # f32 bias add

    # Fold 1/sqrt(d_k) into q once (cheaper than scaling the (seq, seq) scores).
    scale = 1.0 / jnp.sqrt(jnp.float32(d_k))
    qp = qkv[0] * scale
    kp = qkv[1]
    vp = qkv[2]

    # --- head-batched attention ---------------------------------------------
    def to_heads(x):                                          # (seq, D) -> (H, seq, d_k)
        return jnp.transpose(x.reshape(seq, num_head, d_k), (1, 0, 2))

    qh = to_heads(qp).astype(jnp.bfloat16)
    kh = to_heads(kp).astype(jnp.bfloat16)
    vh = to_heads(vp).astype(jnp.bfloat16)

    # scores[h, i, j] = sum_d q[h, i, d] * k[h, j, d]   (head-batched, no .T op)
    scores = jnp.einsum('hqd,hkd->hqk', qh, kh,
                        preferred_element_type=jnp.float32)   # (H, seq, seq) f32

    # Numerically-stable softmax along last axis, exact divide (rows sum to 1).
    m = jnp.max(scores, axis=-1, keepdims=True)
    e = jnp.exp(scores - m)
    s = jnp.sum(e, axis=-1, keepdims=True)
    w = e / s

    attn_ref[0] = w.astype(attn_ref.dtype)                    # one lane-dense store

    o = jnp.einsum('hqk,hkd->hqd', w.astype(jnp.bfloat16), vh,
                   preferred_element_type=jnp.float32)        # (H, seq, d_k) f32

    # Heads back to lane-dense (seq, model_dim), then output projection.
    o_sd = jnp.transpose(o, (1, 0, 2)).reshape(seq, model_dim)
    out = lax.dot_general(
        o_sd.astype(jnp.bfloat16), wo_ref[...],
        dimension_numbers=(((1,), (1,)), ((), ())),
        preferred_element_type=jnp.float32) + bo_ref[...]
    out_ref[0] = out.astype(out_ref.dtype)
    # TODO(synk): optional `mask` argument of the PyTorch forward is not wired
    # in (the mask=None default path is what is implemented here).


# ----------------------------------------------------------------------------
# Wrapper
# ----------------------------------------------------------------------------
def multi_head_attention(q, k, v, params, num_head):
    """Forward pass equivalent to MultiHeadAttention.forward(q, k, v, mask=None)."""
    bs, seq, model_dim = q.shape
    d_k = model_dim // num_head

    # Pack q/k/v projection weights into one (3, D, D) bf16 block; biases f32.
    wqkv = jnp.stack([params["q_w"], params["k_w"], params["v_w"]],
                     axis=0).astype(jnp.bfloat16)             # (3, D, D)
    bqkv = jnp.stack([params["q_b"], params["k_b"], params["v_b"]],
                     axis=0).reshape(3, 1, model_dim)          # (3, 1, D) f32
    wo = params["out_w"].astype(jnp.bfloat16)                  # (D, D)
    bo = params["out_b"].reshape(1, model_dim)                 # (1, D) f32

    kernel = functools.partial(_mha_fused_kernel, num_head=num_head, d_k=d_k)

    per_batch = pl.BlockSpec((1, seq, model_dim), lambda b: (b, 0, 0))
    attn_spec = pl.BlockSpec((1, num_head, seq, seq), lambda b: (b, 0, 0, 0))

    # Advisory cost estimate for the XLA scheduler.
    flops = bs * (8 * seq * model_dim * model_dim + 4 * seq * seq * model_dim)
    bytes_accessed = (
        3 * bs * seq * model_dim * 4        # activations in (f32)
        + 4 * model_dim * model_dim * 2     # weights (bf16)
        + 4 * model_dim * 4                 # biases (f32)
        + bs * seq * model_dim * 4          # output
        + bs * num_head * seq * seq * 4     # attention weights
    )

    out, attn = pl.pallas_call(
        kernel,
        out_shape=(
            jax.ShapeDtypeStruct((bs, seq, model_dim), jnp.float32),
            jax.ShapeDtypeStruct((bs, num_head, seq, seq), jnp.float32),
        ),
        grid=(bs,),
        in_specs=[
            per_batch, per_batch, per_batch,
            pl.BlockSpec((3, model_dim, model_dim), lambda b: (0, 0, 0)),  # Wqkv
            pl.BlockSpec((3, 1, model_dim), lambda b: (0, 0, 0)),          # bqkv
            pl.BlockSpec((model_dim, model_dim), lambda b: (0, 0)),        # Wo
            pl.BlockSpec((1, model_dim), lambda b: (0, 0)),                # bo
        ],
        out_specs=(per_batch, attn_spec),
        compiler_params=pltpu.CompilerParams(
            dimension_semantics=("parallel",),
            vmem_limit_bytes=32 * 1024 * 1024,
        ),
        cost_estimate=pl.CostEstimate(
            flops=int(flops),
            transcendentals=int(bs * num_head * seq * seq),
            bytes_accessed=int(bytes_accessed),
        ),
    )(q, k, v, wqkv, bqkv, wo, bo)
    return out, attn


# ----------------------------------------------------------------------------
# Pure-JAX reference (for correctness check)
# ----------------------------------------------------------------------------
def reference_mha(q, k, v, params, num_head):
    bs, seq, model_dim = q.shape
    d_k = model_dim // num_head

    def lin(x, name):
        return x @ params[f"{name}_w"].T + params[f"{name}_b"]

    qp = lin(q, "q").reshape(bs, seq, num_head, d_k).transpose(0, 2, 1, 3)
    kp = lin(k, "k").reshape(bs, seq, num_head, d_k).transpose(0, 2, 1, 3)
    vp = lin(v, "v").reshape(bs, seq, num_head, d_k).transpose(0, 2, 1, 3)
    scores = jnp.einsum("bhqd,bhkd->bhqk", qp, kp) / jnp.sqrt(jnp.float32(d_k))
    w = jax.nn.softmax(scores, axis=-1)
    o = jnp.einsum("bhqk,bhkd->bhqd", w, vp)
    o = o.transpose(0, 2, 1, 3).reshape(bs, seq, model_dim)
    return o @ params["out_w"].T + params["out_b"], w


# ----------------------------------------------------------------------------
# Main
# ----------------------------------------------------------------------------
if __name__ == "__main__":
    batch, seq, model_dim, num_head = 2, 8, 32, 4

    key = jax.random.PRNGKey(0)
    keys = jax.random.split(key, 12)

    def init_linear(kw, kb, d_out, d_in):
        bound = 1.0 / jnp.sqrt(jnp.float32(d_in))
        w = jax.random.uniform(kw, (d_out, d_in), jnp.float32, -bound, bound)
        b = jax.random.uniform(kb, (d_out,), jnp.float32, -bound, bound)
        return w, b

    params = {}
    for i, name in enumerate(["q", "k", "v", "out"]):
        w, b = init_linear(keys[2 * i], keys[2 * i + 1], model_dim, model_dim)
        params[f"{name}_w"] = w
        params[f"{name}_b"] = b

    q = jax.random.normal(keys[8], (batch, seq, model_dim), jnp.float32)
    k = jax.random.normal(keys[9], (batch, seq, model_dim), jnp.float32)
    v = jax.random.normal(keys[10], (batch, seq, model_dim), jnp.float32)

    out, attn = multi_head_attention(q, k, v, params, num_head)
    out = jax.block_until_ready(out)
    attn = jax.block_until_ready(attn)

    ref_out, ref_attn = reference_mha(q, k, v, params, num_head)
    assert out.shape == (batch, seq, model_dim)
    assert attn.shape == (batch, num_head, seq, seq)
    # Tolerances are relaxed vs exact f32 because all matmuls feed the MXU
    # bf16 operands (with f32 accumulation), per the performance review.
    assert jnp.allclose(out, ref_out, atol=2e-2, rtol=2e-2), "output mismatch vs reference"
    assert jnp.allclose(attn, ref_attn, atol=2e-2, rtol=2e-2), "attn weights mismatch vs reference"

    print("KERNEL_OK")
</pallas_src>

<mosaic_0001>
module attributes {stable_mosaic.version = 11 : i64} {
  func.func @_mha_fused_kernel(%arg0: i32, %arg1: memref<1x8x32xf32, #tpu.memory_space<vmem>>, %arg2: memref<1x8x32xf32, #tpu.memory_space<vmem>>, %arg3: memref<1x8x32xf32, #tpu.memory_space<vmem>>, %arg4: memref<3x32x32xbf16, #tpu.memory_space<vmem>>, %arg5: memref<3x1x32xf32, #tpu.memory_space<vmem>>, %arg6: memref<32x32xbf16, #tpu.memory_space<vmem>>, %arg7: memref<1x32xf32, #tpu.memory_space<vmem>>, %arg8: memref<1x8x32xf32, #tpu.memory_space<vmem>>, %arg9: memref<1x4x8x8xf32, #tpu.memory_space<vmem>>) attributes {dimension_semantics = [#tpu.dimension_semantics<parallel>], iteration_bounds = array<i64: 2>, scalar_prefetch = 0 : i64, scratch_operands = 0 : i64, tpu.core_type = #tpu.core_type<tc>, window_params = [{transform_indices = @transform_0, window_bounds = array<i64: 1, 8, 32>}, {transform_indices = @transform_1, window_bounds = array<i64: 1, 8, 32>}, {transform_indices = @transform_2, window_bounds = array<i64: 1, 8, 32>}, {pipeline_mode = #tpu.pipeline_mode<synchronous>, transform_indices = @transform_3, window_bounds = array<i64: 3, 32, 32>}, {pipeline_mode = #tpu.pipeline_mode<synchronous>, transform_indices = @transform_4, window_bounds = array<i64: 3, 1, 32>}, {pipeline_mode = #tpu.pipeline_mode<synchronous>, transform_indices = @transform_5, window_bounds = array<i64: 32, 32>}, {pipeline_mode = #tpu.pipeline_mode<synchronous>, transform_indices = @transform_6, window_bounds = array<i64: 1, 32>}, {transform_indices = @transform_7, window_bounds = array<i64: 1, 8, 32>}, {transform_indices = @transform_8, window_bounds = array<i64: 1, 4, 8, 8>}]} {
    %c0 = arith.constant 0 : index
    %c0_0 = arith.constant 0 : index
    %c0_1 = arith.constant 0 : index
    %0 = vector.load %arg1[%c0, %c0_0, %c0_1] : memref<1x8x32xf32, #tpu.memory_space<vmem>>, vector<1x8x32xf32>
    %1 = vector.shape_cast %0 : vector<1x8x32xf32> to vector<8x32xf32>
    %2 = arith.truncf %1 : vector<8x32xf32> to vector<8x32xbf16>
    %c0_2 = arith.constant 0 : index
    %c0_3 = arith.constant 0 : index
    %c0_4 = arith.constant 0 : index
    %3 = vector.load %arg2[%c0_2, %c0_3, %c0_4] : memref<1x8x32xf32, #tpu.memory_space<vmem>>, vector<1x8x32xf32>
    %4 = vector.shape_cast %3 : vector<1x8x32xf32> to vector<8x32xf32>
    %5 = arith.truncf %4 : vector<8x32xf32> to vector<8x32xbf16>
    %c0_5 = arith.constant 0 : index
    %c0_6 = arith.constant 0 : index
    %c0_7 = arith.constant 0 : index
    %6 = vector.load %arg3[%c0_5, %c0_6, %c0_7] : memref<1x8x32xf32, #tpu.memory_space<vmem>>, vector<1x8x32xf32>
    %7 = vector.shape_cast %6 : vector<1x8x32xf32> to vector<8x32xf32>
    %8 = arith.truncf %7 : vector<8x32xf32> to vector<8x32xbf16>
    %9 = vector.shape_cast %2 : vector<8x32xbf16> to vector<1x8x32xbf16>
    %10 = vector.shape_cast %5 : vector<8x32xbf16> to vector<1x8x32xbf16>
    %11 = vector.shape_cast %8 : vector<8x32xbf16> to vector<1x8x32xbf16>
    %12 = tpu.concatenate %9, %10, %11 in 0 : vector<1x8x32xbf16>, vector<1x8x32xbf16>, vector<1x8x32xbf16> -> vector<3x8x32xbf16>
    %c0_8 = arith.constant 0 : index
    %c0_9 = arith.constant 0 : index
    %c0_10 = arith.constant 0 : index
    %13 = vector.load %arg4[%c0_8, %c0_9, %c0_10] : memref<3x32x32xbf16, #tpu.memory_space<vmem>>, vector<3x32x32xbf16>
    %cst = arith.constant dense<0.000000e+00> : vector<3x8x32xf32>
    %14 = tpu.matmul %12, %13, %cst {dimension_numbers = #tpu.dot_dimension_numbers<[2], [2], [1], [1], [0, 0, 0, 1, 1, 1], [0], [0]>} : vector<3x8x32xbf16>, vector<3x32x32xbf16>, vector<3x8x32xf32> -> vector<3x8x32xf32>
    %c0_11 = arith.constant 0 : index
    %c0_12 = arith.constant 0 : index
    %c0_13 = arith.constant 0 : index
    %15 = vector.load %arg5[%c0_11, %c0_12, %c0_13] : memref<3x1x32xf32, #tpu.memory_space<vmem>>, vector<3x1x32xf32>
    %16 = vector.broadcast %15 : vector<3x1x32xf32> to vector<3x8x32xf32>
    %17 = arith.addf %14, %16 : vector<3x8x32xf32>
    %cst_14 = arith.constant 8.000000e+00 : f32
    %18 = math.sqrt %cst_14 : f32
    %cst_15 = arith.constant 1.000000e+00 : f32
    %19 = arith.divf %cst_15, %18 : f32
    %20 = vector.extract_strided_slice %17 {offsets = [0, 0, 0], sizes = [1, 8, 32], strides = [1, 1, 1]} : vector<3x8x32xf32> to vector<1x8x32xf32>
    %21 = vector.shape_cast %20 : vector<1x8x32xf32> to vector<8x32xf32>
    %22 = vector.broadcast %19 : f32 to vector<8x32xf32>
    %23 = arith.mulf %21, %22 : vector<8x32xf32>
    %24 = vector.extract_strided_slice %17 {offsets = [1, 0, 0], sizes = [1, 8, 32], strides = [1, 1, 1]} : vector<3x8x32xf32> to vector<1x8x32xf32>
    %25 = vector.shape_cast %24 : vector<1x8x32xf32> to vector<8x32xf32>
    %26 = vector.extract_strided_slice %17 {offsets = [2, 0, 0], sizes = [1, 8, 32], strides = [1, 1, 1]} : vector<3x8x32xf32> to vector<1x8x32xf32>
    %27 = vector.shape_cast %26 : vector<1x8x32xf32> to vector<8x32xf32>
    %28 = vector.shape_cast %23 : vector<8x32xf32> to vector<8x4x8xf32>
    %29 = tpu.transpose %28, [1, 0, 2] : vector<8x4x8xf32> -> vector<4x8x8xf32>
    %30 = arith.truncf %29 : vector<4x8x8xf32> to vector<4x8x8xbf16>
    %31 = vector.shape_cast %25 : vector<8x32xf32> to vector<8x4x8xf32>
    %32 = tpu.transpose %31, [1, 0, 2] : vector<8x4x8xf32> -> vector<4x8x8xf32>
    %33 = arith.truncf %32 : vector<4x8x8xf32> to vector<4x8x8xbf16>
    %34 = vector.shape_cast %27 : vector<8x32xf32> to vector<8x4x8xf32>
    %35 = tpu.transpose %34, [1, 0, 2] : vector<8x4x8xf32> -> vector<4x8x8xf32>
    %36 = arith.truncf %35 : vector<4x8x8xf32> to vector<4x8x8xbf16>
    "tpu.trace_start"() <{level = 10 : i32, message = "hqd,hkd->hqk"}> : () -> ()
    %cst_16 = arith.constant dense<0.000000e+00> : vector<4x8x8xf32>
    %37 = tpu.matmul %30, %33, %cst_16 {dimension_numbers = #tpu.dot_dimension_numbers<[2], [2], [1], [1], [0, 0, 0, 1, 1, 1], [0], [0]>} : vector<4x8x8xbf16>, vector<4x8x8xbf16>, vector<4x8x8xf32> -> vector<4x8x8xf32>
    "tpu.trace_stop"() : () -> ()
    %cst_17 = arith.constant dense<0xFF800000> : vector<4x8xf32>
    %38 = vector.multi_reduction <maximumf>, %37, %cst_17 [2] : vector<4x8x8xf32> to vector<4x8xf32>
    %39 = vector.shape_cast %38 : vector<4x8xf32> to vector<4x8x1xf32>
    %40 = vector.broadcast %39 : vector<4x8x1xf32> to vector<4x8x8xf32>
    %41 = arith.subf %37, %40 : vector<4x8x8xf32>
    %42 = math.exp %41 : vector<4x8x8xf32>
    %cst_18 = arith.constant dense<0.000000e+00> : vector<4x8xf32>
    %43 = vector.multi_reduction <add>, %42, %cst_18 [2] : vector<4x8x8xf32> to vector<4x8xf32>
    %44 = vector.shape_cast %43 : vector<4x8xf32> to vector<4x8x1xf32>
    %45 = vector.broadcast %44 : vector<4x8x1xf32> to vector<4x8x8xf32>
    %46 = arith.divf %42, %45 : vector<4x8x8xf32>
    %c0_19 = arith.constant 0 : index
    %c0_20 = arith.constant 0 : index
    %c0_21 = arith.constant 0 : index
    %c0_22 = arith.constant 0 : index
    %47 = vector.load %arg9[%c0_19, %c0_20, %c0_21, %c0_22] : memref<1x4x8x8xf32, #tpu.memory_space<vmem>>, vector<1x4x8x8xf32>
    %48 = vector.shape_cast %47 : vector<1x4x8x8xf32> to vector<4x8x8xf32>
    %49 = vector.shape_cast %46 : vector<4x8x8xf32> to vector<1x4x8x8xf32>
    tpu.vector_store %arg9[%c0_19, %c0_20, %c0_21, %c0_22], %49 {strides = array<i32>} : memref<1x4x8x8xf32, #tpu.memory_space<vmem>>, vector<1x4x8x8xf32>,
    %50 = arith.truncf %46 : vector<4x8x8xf32> to vector<4x8x8xbf16>
    "tpu.trace_start"() <{level = 10 : i32, message = "hqk,hkd->hqd"}> : () -> ()
    %cst_23 = arith.constant dense<0.000000e+00> : vector<4x8x8xf32>
    %51 = tpu.matmul %50, %36, %cst_23 {dimension_numbers = #tpu.dot_dimension_numbers<[2], [1], [1], [2], [0, 0, 0, 1, 1, 2], [0], [0]>} : vector<4x8x8xbf16>, vector<4x8x8xbf16>, vector<4x8x8xf32> -> vector<4x8x8xf32>
    "tpu.trace_stop"() : () -> ()
    %52 = tpu.transpose %51, [1, 0, 2] : vector<4x8x8xf32> -> vector<8x4x8xf32>
    %53 = vector.shape_cast %52 : vector<8x4x8xf32> to vector<8x32xf32>
    %54 = arith.truncf %53 : vector<8x32xf32> to vector<8x32xbf16>
    %c0_24 = arith.constant 0 : index
    %c0_25 = arith.constant 0 : index
    %55 = vector.load %arg6[%c0_24, %c0_25] : memref<32x32xbf16, #tpu.memory_space<vmem>>, vector<32x32xbf16>
    %cst_26 = arith.constant dense<0.000000e+00> : vector<8x32xf32>
    %56 = tpu.matmul %54, %55, %cst_26 {dimension_numbers = #tpu.dot_dimension_numbers<[1], [1], [0], [0], [0, 0, 1, 0], [], []>} : vector<8x32xbf16>, vector<32x32xbf16>, vector<8x32xf32> -> vector<8x32xf32>
    %c0_27 = arith.constant 0 : index
    %c0_28 = arith.constant 0 : index
    %57 = vector.load %arg7[%c0_27, %c0_28] : memref<1x32xf32, #tpu.memory_space<vmem>>, vector<1x32xf32>
    %58 = vector.broadcast %57 : vector<1x32xf32> to vector<8x32xf32>
    %59 = arith.addf %56, %58 : vector<8x32xf32>
    %c0_29 = arith.constant 0 : index
    %c0_30 = arith.constant 0 : index
    %c0_31 = arith.constant 0 : index
    %60 = vector.load %arg8[%c0_29, %c0_30, %c0_31] : memref<1x8x32xf32, #tpu.memory_space<vmem>>, vector<1x8x32xf32>
    %61 = vector.shape_cast %60 : vector<1x8x32xf32> to vector<8x32xf32>
    %62 = vector.shape_cast %59 : vector<8x32xf32> to vector<1x8x32xf32>
    tpu.vector_store %arg8[%c0_29, %c0_30, %c0_31], %62 {strides = array<i32>} : memref<1x8x32xf32, #tpu.memory_space<vmem>>, vector<1x8x32xf32>,
    return
  }
  func.func @transform_0(%arg0: i32) -> (i32, i32, i32) {
    %c0_i32 = arith.constant 0 : i32
    %c0_i32_0 = arith.constant 0 : i32
    %c0_i32_1 = arith.constant 0 : i32
    return %arg0, %c0_i32, %c0_i32_0 : i32, i32, i32
  }
  func.func @transform_1(%arg0: i32) -> (i32, i32, i32) {
    %c0_i32 = arith.constant 0 : i32
    %c0_i32_0 = arith.constant 0 : i32
    %c0_i32_1 = arith.constant 0 : i32
    return %arg0, %c0_i32, %c0_i32_0 : i32, i32, i32
  }
  func.func @transform_2(%arg0: i32) -> (i32, i32, i32) {
    %c0_i32 = arith.constant 0 : i32
    %c0_i32_0 = arith.constant 0 : i32
    %c0_i32_1 = arith.constant 0 : i32
    return %arg0, %c0_i32, %c0_i32_0 : i32, i32, i32
  }
  func.func @transform_3(%arg0: i32) -> (i32, i32, i32) {
    %c0_i32 = arith.constant 0 : i32
    %c0_i32_0 = arith.constant 0 : i32
    %c0_i32_1 = arith.constant 0 : i32
    %c0_i32_2 = arith.constant 0 : i32
    return %c0_i32, %c0_i32_0, %c0_i32_1 : i32, i32, i32
  }
  func.func @transform_4(%arg0: i32) -> (i32, i32, i32) {
    %c0_i32 = arith.constant 0 : i32
    %c0_i32_0 = arith.constant 0 : i32
    %c0_i32_1 = arith.constant 0 : i32
    %c0_i32_2 = arith.constant 0 : i32
    return %c0_i32, %c0_i32_0, %c0_i32_1 : i32, i32, i32
  }
  func.func @transform_5(%arg0: i32) -> (i32, i32) {
    %c0_i32 = arith.constant 0 : i32
    %c0_i32_0 = arith.constant 0 : i32
    %c0_i32_1 = arith.constant 0 : i32
    return %c0_i32, %c0_i32_0 : i32, i32
  }
  func.func @transform_6(%arg0: i32) -> (i32, i32) {
    %c0_i32 = arith.constant 0 : i32
    %c0_i32_0 = arith.constant 0 : i32
    %c0_i32_1 = arith.constant 0 : i32
    return %c0_i32, %c0_i32_0 : i32, i32
  }
  func.func @transform_7(%arg0: i32) -> (i32, i32, i32) {
    %c0_i32 = arith.constant 0 : i32
    %c0_i32_0 = arith.constant 0 : i32
    %c0_i32_1 = arith.constant 0 : i32
    return %arg0, %c0_i32, %c0_i32_0 : i32, i32, i32
  }
  func.func @transform_8(%arg0: i32) -> (i32, i32, i32, i32) {
    %c0_i32 = arith.constant 0 : i32
    %c0_i32_0 = arith.constant 0 : i32
    %c0_i32_1 = arith.constant 0 : i32
    %c0_i32_2 = arith.constant 0 : i32
    return %arg0, %c0_i32, %c0_i32_0, %c0_i32_1 : i32, i32, i32, i32
  }
}

</mosaic_0001>

<llo_original>
// kernel: tpu_custom_call.1
$region0: #{tpu_custom_call.1}
  #allocation0 [shape = 'u32[]', space=smem, size = 0x4, offset = 0x4, fixed_abs, tag = 'smem constant byte address 0x4 - core index']
  #allocation1 [shape = 'u32[72,128]{1,0:T(1,128)}', space=vmem, size = 0x9000, scoped, tag = 'internal scratch']
  %s0 = inlined_call_operand.hbm [shape: f32[2,8,32], index: 0, kind: input, shape index: {}]
  %s1 = inlined_call_operand.hbm [shape: f32[2,8,32], index: 1, kind: input, shape index: {}]
  %s2 = inlined_call_operand.hbm [shape: f32[2,8,32], index: 2, kind: input, shape index: {}]
  %s3 = inlined_call_operand.hbm [shape: bf16[3,32,32], index: 3, kind: input, shape index: {}]
  %s4 = inlined_call_operand.vmem [shape: f32[3,1,32], index: 4, kind: input, shape index: {}]
  %s5 = inlined_call_operand.hbm [shape: bf16[32,32], index: 5, kind: input, shape index: {}]
  %s6 = inlined_call_operand.vmem [shape: f32[1,32], index: 6, kind: input, shape index: {}]
  %s7 = inlined_call_operand.hbm [shape: f32[2,8,32], index: 7, kind: output, shape index: {0}]
  %s8 = inlined_call_operand.hbm [shape: f32[2,4,8,8], index: 8, kind: output, shape index: {1}]
  %9 = xla_tuple %s7, %s8
  %s10 = sld [smem:[#allocation0]]
  $region89: #{tpu_custom_call.1} parent=0
    _
  %s12 = ssub.s32 1, %s10
  %s13 = scalar_select 0, %s12, %s10
  $region1: #{tpu_custom_call.1} parent=0
    #allocation2 [shape = 'u8[8192]{0}', space=vmem, size = 0x2000, scoped, tag = 'input window, operand 0']
    #allocation3 [shape = 's32[2]{0}', space=sflag, size = 0x8, scoped, tag = 'scoped memory for tpu_custom_call.1']
    #allocation4 [shape = 's32[2]{0}', space=sflag, size = 0x8, scoped, tag = 'scoped memory for tpu_custom_call.1']
    #allocation5 [shape = 'u8[8192]{0}', space=vmem, size = 0x2000, scoped, tag = 'input window, operand 1']
    #allocation6 [shape = 's32[2]{0}', space=sflag, size = 0x8, scoped, tag = 'scoped memory for tpu_custom_call.1']
    #allocation7 [shape = 'u8[8192]{0}', space=vmem, size = 0x2000, scoped, tag = 'input window, operand 2']
    #allocation8 [shape = 'u8[24576]{0}', space=vmem, size = 0x6000, scoped, tag = 'input window, operand 3, single buffered']
    #allocation9 [shape = 's32[1]{0}', space=sflag, size = 0x4, scoped, tag = 'scoped memory for tpu_custom_call.1']
    #allocation10 [shape = 'u8[8192]{0}', space=vmem, size = 0x2000, scoped, tag = 'input window, operand 5, single buffered']
    #allocation11 [shape = 'u8[8192]{0}', space=vmem, size = 0x2000, scoped, tag = 'output window, operand 0']
    #allocation12 [shape = 'u8[32768]{0}', space=vmem, size = 0x8000, scoped, tag = 'output window, operand 1']
    #allocation13 [shape = 's32[2]{0}', space=sflag, size = 0x8, scoped, tag = 'scoped memory for tpu_custom_call.1']
    %14 = vsyncpa [#allocation3], 0
    %s15 = scalar_lea.sflag [#allocation3], 1
    %16 = vsyncpa %s15, 0
    %17 = vsyncpa [#allocation6], 0
    %s18 = scalar_lea.sflag [#allocation6], 1
    %19 = vsyncpa %s18, 0
    %20 = vsyncpa [#allocation9], 0
    %21 = vsyncpa [#allocation4], 0
    %s22 = scalar_lea.sflag [#allocation4], 1
    %23 = vsyncpa %s22, 0
    %24 = vsyncpa [#allocation13], 0
    %s25 = scalar_lea.sflag [#allocation13], 1
    %26 = vsyncpa %s25, 0
    loop: start=0, step=1, limit=4
    $region2: #{tpu_custom_call.1} parent=1 // loop_pre_header
      _
    $region3: #{tpu_custom_call.1} parent=1 // loop_header
      %s28 = sphi 0, %s32
      %p29 = scmp.ge.s32.totalorder %s28, 4
      %s38 = sphi 0, %s40
      %s41 = sphi 0, %s38
      %s42 = sphi 0, %s41
      %s58 = sphi 0, %s42
      %s64 = sphi 0, %s66
      %s67 = sphi 0, %s64
      %s68 = sphi 0, %s67
      %s84 = sphi 0, %s68
      %s90 = sphi 0, %s92
      %s93 = sphi 0, %s90
      %s94 = sphi 0, %s93
      %s110 = sphi 0, %s94
      %s114 = sphi 0, %s114
      %s116 = sphi 0, %s114
      %s117 = sphi 0, %s116
      %s131 = sphi 0, %s117
      %s135 = sphi 0, %s135
      %s137 = sphi 0, %s135
      %s138 = sphi 0, %s137
      %s152 = sphi 0, %s138
      %s156 = sphi 0, %s156
      %s158 = sphi 0, %s156
      %s159 = sphi 0, %s158
      %s173 = sphi 0, %s159
      %s177 = sphi 0, %s177
      %s179 = sphi 0, %s177
      %s180 = sphi 0, %s179
      %s194 = sphi 0, %s180
      %s200 = sphi 0, %s202
      %s203 = sphi 0, %s200
      %s204 = sphi 0, %s203
      %s220 = sphi 0, %s204
      %s226 = sphi 0, %s228
      %s229 = sphi 0, %s226
      %s230 = sphi 0, %s229
      %s246 = sphi 0, %s230
    $region4: #{tpu_custom_call.1} parent=1 // loop_header_branch
      %31 = sbr.rel (%p29) target = $region8
    $region5: #{tpu_custom_call.1} parent=1 // loop_body
      %s33 = ssub.s32 %s28, 1
      %s34 = ssub.s32 %s28, 2
      %s35 = sadd.s32 %s28, 1
      %s36 = ssub.s32 %s28, %s35
      %p37 = scmp.eq.s32.totalorder %s36, 0
      %s39 = sadd.s32 %s38, 1
      %s40 = scalar_select %p37, %s38, %s39
      %p43 = pneg %p37
      %p44 = scmp.eq.s32.totalorder %s28, 1
      %p45 = por %p43, %p44
      %p46 = scmp.ne.s32.totalorder %s38, %s41
      %p47 = scmp.eq.s32.totalorder %s28, 0
      %p48 = por %p46, %p47
      %p49 = scmp.ne.s32.totalorder %s38, %s41
      %p50 = scmp.eq.s32.totalorder %s33, 1
      %p51 = por %p49, %p50
      %p52 = scmp.ne.s32.totalorder %s41, %s42
      %p53 = scmp.eq.s32.totalorder %s33, 0
      %p54 = por %p52, %p53
      %p55 = scmp.ne.s32.totalorder %s41, %s42
      %p56 = scmp.eq.s32.totalorder %s34, 1
      %p57 = por %p55, %p56
      %p59 = scmp.ne.s32.totalorder %s42, %s58
      %p60 = scmp.eq.s32.totalorder %s34, 0
      %p61 = por %p59, %p60
      %s62 = ssub.s32 %s28, %s35
      %p63 = scmp.eq.s32.totalorder %s62, 0
      %s65 = sadd.s32 %s64, 1
      %s66 = scalar_select %p63, %s64, %s65
      %p69 = pneg %p63
      %p70 = scmp.eq.s32.totalorder %s28, 1
      %p71 = por %p69, %p70
      %p72 = scmp.ne.s32.totalorder %s64, %s67
      %p73 = scmp.eq.s32.totalorder %s28, 0
      %p74 = por %p72, %p73
      %p75 = scmp.ne.s32.totalorder %s64, %s67
      %p76 = scmp.eq.s32.totalorder %s33, 1
      %p77 = por %p75, %p76
      %p78 = scmp.ne.s32.totalorder %s67, %s68
      %p79 = scmp.eq.s32.totalorder %s33, 0
      %p80 = por %p78, %p79
      %p81 = scmp.ne.s32.totalorder %s67, %s68
      %p82 = scmp.eq.s32.totalorder %s34, 1
      %p83 = por %p81, %p82
      %p85 = scmp.ne.s32.totalorder %s68, %s84
      %p86 = scmp.eq.s32.totalorder %s34, 0
      %p87 = por %p85, %p86
      %s88 = ssub.s32 %s28, %s35
      %p89 = scmp.eq.s32.totalorder %s88, 0
      %s91 = sadd.s32 %s90, 1
      %s92 = scalar_select %p89, %s90, %s91
      %p95 = pneg %p89
      %p96 = scmp.eq.s32.totalorder %s28, 1
      %p97 = por %p95, %p96
      %p98 = scmp.ne.s32.totalorder %s90, %s93
      %p99 = scmp.eq.s32.totalorder %s28, 0
      %p100 = por %p98, %p99
      %p101 = scmp.ne.s32.totalorder %s90, %s93
      %p102 = scmp.eq.s32.totalorder %s33, 1
      %p103 = por %p101, %p102
      %p104 = scmp.ne.s32.totalorder %s93, %s94
      %p105 = scmp.eq.s32.totalorder %s33, 0
      %p106 = por %p104, %p105
      %p107 = scmp.ne.s32.totalorder %s93, %s94
      %p108 = scmp.eq.s32.totalorder %s34, 1
      %p109 = por %p107, %p108
      %p111 = scmp.ne.s32.totalorder %s94, %s110
      %p112 = scmp.eq.s32.totalorder %s34, 0
      %p113 = por %p111, %p112
      %s115 = sadd.s32 %s114, 1
      %p118 = scmp.eq.s32.totalorder %s28, 1
      %p119 = scmp.ne.s32.totalorder %s114, %s116
      %p120 = scmp.eq.s32.totalorder %s28, 0
      %p121 = por %p119, %p120
      %p122 = scmp.ne.s32.totalorder %s114, %s116
      %p123 = scmp.eq.s32.totalorder %s33, 1
      %p124 = por %p122, %p123
      %p125 = scmp.ne.s32.totalorder %s116, %s117
      %p126 = scmp.eq.s32.totalorder %s33, 0
      %p127 = por %p125, %p126
      %p128 = scmp.ne.s32.totalorder %s116, %s117
      %p129 = scmp.eq.s32.totalorder %s34, 1
      %p130 = por %p128, %p129
      %p132 = scmp.ne.s32.totalorder %s117, %s131
      %p133 = scmp.eq.s32.totalorder %s34, 0
      %p134 = por %p132, %p133
      %s136 = sadd.s32 %s135, 1
      %p139 = scmp.eq.s32.totalorder %s28, 1
      %p140 = scmp.ne.s32.totalorder %s135, %s137
      %p141 = scmp.eq.s32.totalorder %s28, 0
      %p142 = por %p140, %p141
      %p143 = scmp.ne.s32.totalorder %s135, %s137
      %p144 = scmp.eq.s32.totalorder %s33, 1
      %p145 = por %p143, %p144
      %p146 = scmp.ne.s32.totalorder %s137, %s138
      %p147 = scmp.eq.s32.totalorder %s33, 0
      %p148 = por %p146, %p147
      %p149 = scmp.ne.s32.totalorder %s137, %s138
      %p150 = scmp.eq.s32.totalorder %s34, 1
      %p151 = por %p149, %p150
      %p153 = scmp.ne.s32.totalorder %s138, %s152
      %p154 = scmp.eq.s32.totalorder %s34, 0
      %p155 = por %p153, %p154
      %s157 = sadd.s32 %s156, 1
      %p160 = scmp.eq.s32.totalorder %s28, 1
      %p161 = scmp.ne.s32.totalorder %s156, %s158
      %p162 = scmp.eq.s32.totalorder %s28, 0
      %p163 = por %p161, %p162
      %p164 = scmp.ne.s32.totalorder %s156, %s158
      %p165 = scmp.eq.s32.totalorder %s33, 1
      %p166 = por %p164, %p165
      %p167 = scmp.ne.s32.totalorder %s158, %s159
      %p168 = scmp.eq.s32.totalorder %s33, 0
      %p169 = por %p167, %p168
      %p170 = scmp.ne.s32.totalorder %s158, %s159
      %p171 = scmp.eq.s32.totalorder %s34, 1
      %p172 = por %p170, %p171
      %p174 = scmp.ne.s32.totalorder %s159, %s173
      %p175 = scmp.eq.s32.totalorder %s34, 0
      %p176 = por %p174, %p175
      %s178 = sadd.s32 %s177, 1
      %p181 = scmp.eq.s32.totalorder %s28, 1
      %p182 = scmp.ne.s32.totalorder %s177, %s179
      %p183 = scmp.eq.s32.totalorder %s28, 0
      %p184 = por %p182, %p183
      %p185 = scmp.ne.s32.totalorder %s177, %s179
      %p186 = scmp.eq.s32.totalorder %s33, 1
      %p187 = por %p185, %p186
      %p188 = scmp.ne.s32.totalorder %s179, %s180
      %p189 = scmp.eq.s32.totalorder %s33, 0
      %p190 = por %p188, %p189
      %p191 = scmp.ne.s32.totalorder %s179, %s180
      %p192 = scmp.eq.s32.totalorder %s34, 1
      %p193 = por %p191, %p192
      %p195 = scmp.ne.s32.totalorder %s180, %s194
      %p196 = scmp.eq.s32.totalorder %s34, 0
      %p197 = por %p195, %p196
      %s198 = ssub.s32 %s28, %s35
      %p199 = scmp.eq.s32.totalorder %s198, 0
      %s201 = sadd.s32 %s200, 1
      %s202 = scalar_select %p199, %s200, %s201
      %p205 = pneg %p199
      %p206 = scmp.eq.s32.totalorder %s28, 1
      %p207 = por %p205, %p206
      %p208 = scmp.ne.s32.totalorder %s200, %s203
      %p209 = scmp.eq.s32.totalorder %s28, 0
      %p210 = por %p208, %p209
      %p211 = scmp.ne.s32.totalorder %s200, %s203
      %p212 = scmp.eq.s32.totalorder %s33, 1
      %p213 = por %p211, %p212
      %p214 = scmp.ne.s32.totalorder %s203, %s204
      %p215 = scmp.eq.s32.totalorder %s33, 0
      %p216 = por %p214, %p215
      %p217 = scmp.ne.s32.totalorder %s203, %s204
      %p218 = scmp.eq.s32.totalorder %s34, 1
      %p219 = por %p217, %p218
      %p221 = scmp.ne.s32.totalorder %s204, %s220
      %p222 = scmp.eq.s32.totalorder %s34, 0
      %p223 = por %p221, %p222
      %s224 = ssub.s32 %s28, %s35
      %p225 = scmp.eq.s32.totalorder %s224, 0
      %s227 = sadd.s32 %s226, 1
      %s228 = scalar_select %p225, %s226, %s227
      %p231 = pneg %p225
      %p232 = scmp.eq.s32.totalorder %s28, 1
      %p233 = por %p231, %p232
      %p234 = scmp.ne.s32.totalorder %s226, %s229
      %p235 = scmp.eq.s32.totalorder %s28, 0
      %p236 = por %p234, %p235
      %p237 = scmp.ne.s32.totalorder %s226, %s229
      %p238 = scmp.eq.s32.totalorder %s33, 1
      %p239 = por %p237, %p238
      %p240 = scmp.ne.s32.totalorder %s229, %s230
      %p241 = scmp.eq.s32.totalorder %s33, 0
      %p242 = por %p240, %p241
      %p243 = scmp.ne.s32.totalorder %s229, %s230
      %p244 = scmp.eq.s32.totalorder %s34, 1
      %p245 = por %p243, %p244
      %p247 = scmp.ne.s32.totalorder %s230, %s246
      %p248 = scmp.eq.s32.totalorder %s34, 0
      %p249 = por %p247, %p248
      %p250 = scmp.le.s32.totalorder 1, %s28
      %p251 = scmp.lt.s32.totalorder %s28, 3
      %p252 = pnand %p250, %p251
      %p253 = pneg %p252
      // Predicated region
      $region9: #{tpu_custom_call.1} parent=5 // pred_check
        _
      $region10: #{tpu_custom_call.1} parent=5 // pred_check_branch
        %255 = sbr.rel (%p252) target = $region12
      $region11: #{tpu_custom_call.1} parent=5 // pred_region
        %s256 = ssub.s32 %s28, 1
        // Predicated region
        $region13: #{tpu_custom_call.1} parent=11 // pred_check
          %p257 = pneg %p127
        $region14: #{tpu_custom_call.1} parent=11 // pred_check_branch
          %259 = sbr.rel (%p257) target = $region16
        $region15: #{tpu_custom_call.1} parent=11 // pred_region
          %261 = vsyncadd [#allocation9], 0
          %s262 = sshll.u32 %s3, 4
          %s263 = int_to_ptr.hbm [resolvable:$true] %s262
          %s264 = sshll.u32 [#allocation8], 4
          %s265 = int_to_ptr.vmem [resolvable:$true] %s264
          %270 = dma.hbm_to_vmem [thread:$0]  %s263, 768, %s265, [#allocation9], 64, 64, 4
        $region16: #{tpu_custom_call.1} parent=11 // pred_fallthru
          _
        // Predicated region
        $region17: #{tpu_custom_call.1} parent=11 // pred_check
          %p271 = pneg %p148
        $region18: #{tpu_custom_call.1} parent=11 // pred_check_branch
          %273 = sbr.rel (%p271) target = $region20
        $region19: #{tpu_custom_call.1} parent=11 // pred_region
          _
        $region20: #{tpu_custom_call.1} parent=11 // pred_fallthru
          _
        // Predicated region
        $region21: #{tpu_custom_call.1} parent=11 // pred_check
          %p274 = pneg %p169
        $region22: #{tpu_custom_call.1} parent=11 // pred_check_branch
          %276 = sbr.rel (%p274) target = $region24
        $region23: #{tpu_custom_call.1} parent=11 // pred_region
          %278 = vsyncadd [#allocation9], 0
          %s279 = sshll.u32 %s5, 4
          %s280 = int_to_ptr.hbm [resolvable:$true] %s279
          %s281 = sshll.u32 [#allocation10], 4
          %s282 = int_to_ptr.vmem [resolvable:$true] %s281
          %287 = dma.hbm_to_vmem [thread:$0]  %s280, 256, %s282, [#allocation9], 64, 64, 4
        $region24: #{tpu_custom_call.1} parent=11 // pred_fallthru
          _
        // Predicated region
        $region25: #{tpu_custom_call.1} parent=11 // pred_check
          %p288 = pneg %p190
        $region26: #{tpu_custom_call.1} parent=11 // pred_check_branch
          %290 = sbr.rel (%p288) target = $region28
        $region27: #{tpu_custom_call.1} parent=11 // pred_region
          _
        $region28: #{tpu_custom_call.1} parent=11 // pred_fallthru
          _
      $region12: #{tpu_custom_call.1} parent=5 // pred_fallthru
        _
      %p291 = scmp.lt.s32.totalorder %s28, 2
      // Predicated region
      $region29: #{tpu_custom_call.1} parent=5 // pred_check
        %p292 = pneg %p291
      $region30: #{tpu_custom_call.1} parent=5 // pred_check_branch
        %294 = sbr.rel (%p292) target = $region32
      $region31: #{tpu_custom_call.1} parent=5 // pred_region
        // Predicated region
        $region33: #{tpu_custom_call.1} parent=31 // pred_check
          %p295 = pneg %p48
        $region34: #{tpu_custom_call.1} parent=31 // pred_check_branch
          %297 = sbr.rel (%p295) target = $region36
        $region35: #{tpu_custom_call.1} parent=31 // pred_region
          %s298 = sand.u32 %s38, 1
          %s299 = scalar_lea.sflag [#allocation3], %s298
          %s300 = sand.u32 %s38, 1
          %s301 = smul.addr %s300, 8
          %s302 = scalar_lea.vmem [#allocation2], %s301
          %304 = vsyncadd %s299, 0
          %s305 = smul.addr %s28, 8
          %s306 = scalar_lea.hbm %s0, %s305
          %s308 = sshll.u32 %s306, 4
          %s309 = int_to_ptr.hbm [resolvable:$true] %s308
          %s310 = sshll.u32 %s302, 4
          %s311 = int_to_ptr.vmem [resolvable:$true] %s310
          %313 = dma.hbm_to_vmem [thread:$0]  %s309, 128, %s311, %s299
        $region36: #{tpu_custom_call.1} parent=31 // pred_fallthru
          _
        // Predicated region
        $region37: #{tpu_custom_call.1} parent=31 // pred_check
          %p314 = pneg %p74
        $region38: #{tpu_custom_call.1} parent=31 // pred_check_branch
          %316 = sbr.rel (%p314) target = $region40
        $region39: #{tpu_custom_call.1} parent=31 // pred_region
          %s317 = sand.u32 %s28, 1
          %s318 = scalar_lea.sflag [#allocation6], %s317
          %s319 = sand.u32 %s64, 1
          %s320 = smul.addr %s319, 8
          %s321 = scalar_lea.vmem [#allocation5], %s320
          %323 = vsyncadd %s318, 0
          %s324 = smul.addr %s28, 8
          %s325 = scalar_lea.hbm %s1, %s324
          %s327 = sshll.u32 %s325, 4
          %s328 = int_to_ptr.hbm [resolvable:$true] %s327
          %s329 = sshll.u32 %s321, 4
          %s330 = int_to_ptr.vmem [resolvable:$true] %s329
          %332 = dma.hbm_to_vmem [thread:$0]  %s328, 128, %s330, %s318
        $region40: #{tpu_custom_call.1} parent=31 // pred_fallthru
          _
        // Predicated region
        $region41: #{tpu_custom_call.1} parent=31 // pred_check
          %p333 = pneg %p100
        $region42: #{tpu_custom_call.1} parent=31 // pred_check_branch
          %335 = sbr.rel (%p333) target = $region44
        $region43: #{tpu_custom_call.1} parent=31 // pred_region
          %s336 = sand.u32 %s28, 1
          %s337 = scalar_lea.sflag [#allocation6], %s336
          %s338 = sand.u32 %s90, 1
          %s339 = smul.addr %s338, 8
          %s340 = scalar_lea.vmem [#allocation7], %s339
          %342 = vsyncadd %s337, 0
          %s343 = smul.addr %s28, 8
          %s344 = scalar_lea.hbm %s2, %s343
          %s346 = sshll.u32 %s344, 4
          %s347 = int_to_ptr.hbm [resolvable:$true] %s346
          %s348 = sshll.u32 %s340, 4
          %s349 = int_to_ptr.vmem [resolvable:$true] %s348
          %351 = dma.hbm_to_vmem [thread:$0]  %s347, 128, %s349, %s337
        $region44: #{tpu_custom_call.1} parent=31 // pred_fallthru
          _
      $region32: #{tpu_custom_call.1} parent=5 // pred_fallthru
        _
      %p352 = scmp.le.s32.totalorder 1, %s28
      %p353 = scmp.lt.s32.totalorder %s28, 3
      %p354 = pnand %p352, %p353
      %p355 = pneg %p354
      // Predicated region
      $region45: #{tpu_custom_call.1} parent=5 // pred_check
        _
      $region46: #{tpu_custom_call.1} parent=5 // pred_check_branch
        %357 = sbr.rel (%p354) target = $region48
      $region47: #{tpu_custom_call.1} parent=5 // pred_region
        %s358 = ssub.s32 %s28, 1
        %s359 = sand.u32 %s41, 1
        %s360 = scalar_lea.sflag [#allocation3], %s359
        %s361 = sand.u32 %s41, 1
        %s362 = smul.addr %s361, 8
        %s363 = scalar_lea.vmem [#allocation2], %s362
        // Predicated region
        $region49: #{tpu_custom_call.1} parent=47 // pred_check
          %p364 = pneg %p54
        $region50: #{tpu_custom_call.1} parent=47 // pred_check_branch
          %366 = sbr.rel (%p364) target = $region52
        $region51: #{tpu_custom_call.1} parent=47 // pred_region
          %368 = dma.done %s360, 128
        $region52: #{tpu_custom_call.1} parent=47 // pred_fallthru
          _
        %s369 = sand.u32 %s33, 1
        %s370 = scalar_lea.sflag [#allocation6], %s369
        %s371 = sand.u32 %s67, 1
        %s372 = smul.addr %s371, 8
        %s373 = scalar_lea.vmem [#allocation5], %s372
        // Predicated region
        $region53: #{tpu_custom_call.1} parent=47 // pred_check
          %p374 = pneg %p80
        $region54: #{tpu_custom_call.1} parent=47 // pred_check_branch
          %376 = sbr.rel (%p374) target = $region56
        $region55: #{tpu_custom_call.1} parent=47 // pred_region
          %378 = dma.done %s370, 128
        $region56: #{tpu_custom_call.1} parent=47 // pred_fallthru
          _
        %s379 = sand.u32 %s33, 1
        %s380 = scalar_lea.sflag [#allocation6], %s379
        %s381 = sand.u32 %s93, 1
        %s382 = smul.addr %s381, 8
        %s383 = scalar_lea.vmem [#allocation7], %s382
        // Predicated region
        $region57: #{tpu_custom_call.1} parent=47 // pred_check
          %p384 = pneg %p106
        $region58: #{tpu_custom_call.1} parent=47 // pred_check_branch
          %386 = sbr.rel (%p384) target = $region60
        $region59: #{tpu_custom_call.1} parent=47 // pred_region
          %388 = dma.done %s380, 128
        $region60: #{tpu_custom_call.1} parent=47 // pred_fallthru
          _
        // Predicated region
        $region61: #{tpu_custom_call.1} parent=47 // pred_check
          %p389 = pneg %p127
        $region62: #{tpu_custom_call.1} parent=47 // pred_check_branch
          %391 = sbr.rel (%p389) target = $region64
        $region63: #{tpu_custom_call.1} parent=47 // pred_region
          %393 = dma.done [#allocation9], 768
        $region64: #{tpu_custom_call.1} parent=47 // pred_fallthru
          _
        // Predicated region
        $region65: #{tpu_custom_call.1} parent=47 // pred_check
          %p394 = pneg %p169
        $region66: #{tpu_custom_call.1} parent=47 // pred_check_branch
          %396 = sbr.rel (%p394) target = $region68
        $region67: #{tpu_custom_call.1} parent=47 // pred_region
          %398 = dma.done [#allocation9], 256
        $region68: #{tpu_custom_call.1} parent=47 // pred_fallthru
          _
        %s399 = sand.u32 %s41, 1
        %s400 = scalar_lea.sflag [#allocation3], %s399
        %s401 = sand.u32 %s41, 1
        %s402 = smul.addr %s401, 8
        %s403 = scalar_lea.vmem [#allocation2], %s402
        %p404 = pneg %p54
        %p405 = pneg %p51
        %s406 = sand.u32 %s33, 1
        %s407 = scalar_lea.sflag [#allocation6], %s406
        %s408 = sand.u32 %s67, 1
        %s409 = smul.addr %s408, 8
        %s410 = scalar_lea.vmem [#allocation5], %s409
        %p411 = pneg %p80
        %p412 = pneg %p77
        %s413 = sand.u32 %s33, 1
        %s414 = scalar_lea.sflag [#allocation6], %s413
        %s415 = sand.u32 %s93, 1
        %s416 = smul.addr %s415, 8
        %s417 = scalar_lea.vmem [#allocation7], %s416
        %p418 = pneg %p106
        %p419 = pneg %p103
        %p420 = pneg %p127
        %p421 = pneg %p124
        %p422 = pneg %p148
        %p423 = pneg %p145
        %p424 = pneg %p169
        %p425 = pneg %p166
        %p426 = pneg %p190
        %p427 = pneg %p187
        %p428 = pneg %p216
        %p429 = pneg %p213
        %s430 = sand.u32 %s203, 1
        %s431 = scalar_lea.sflag [#allocation4], %s430
        %s432 = sand.u32 %s203, 1
        %s433 = smul.addr %s432, 8
        %s434 = scalar_lea.vmem [#allocation11], %s433
        %p435 = pneg %p242
        %p436 = pneg %p239
        %s437 = sand.u32 %s229, 1
        %s438 = scalar_lea.sflag [#allocation13], %s437
        %s439 = sand.u32 %s229, 1
        %s440 = smul.addr %s439, 32
        %s441 = scalar_lea.vmem [#allocation12], %s440
        %v443 = vld [vmem:[%s363] sm:$0xff]
        %v444 = vpack.c.bf16 %v443, %v443
        %v445 = vld [vmem:[%s373] sm:$0xff]
        %v446 = vpack.c.bf16 %v445, %v445
        %v447 = vld [vmem:[%s383] sm:$0xff]
        %v448 = vpack.c.bf16 %v447, %v447
        %v449 = vld [vmem:[#allocation8] sm:$0xf]
        %v450 = vld [vmem:[#allocation8 + $0x4] sm:$0xf]
        %v451 = vld [vmem:[#allocation8 + $0x8] sm:$0xf]
        %v452 = vld [vmem:[#allocation8 + $0xc] sm:$0xf]
        %v453 = vld [vmem:[#allocation8 + $0x10] sm:$0xf]
        %v454 = vld [vmem:[#allocation8 + $0x14] sm:$0xf]
        %v455 = vld [vmem:[#allocation8 + $0x18] sm:$0xf]
        %v456 = vld [vmem:[#allocation8 + $0x1c] sm:$0xf]
        %v457 = vld [vmem:[#allocation8 + $0x20] sm:$0xf]
        %v458 = vld [vmem:[#allocation8 + $0x24] sm:$0xf]
        %v459 = vld [vmem:[#allocation8 + $0x28] sm:$0xf]
        %v460 = vld [vmem:[#allocation8 + $0x2c] sm:$0xf]
        %v461 = vld [vmem:[%s4] sm:$0x1]
        %v462 = vld [vmem:[%s4 + $0x1] sm:$0x1]
        %v463 = vld [vmem:[%s4 + $0x2] sm:$0x1]
        %v467 = vperm.slane %v461, 0
        %v468 = vperm.slane %v462, 0
        %v469 = vperm.slane %v463, 0
        %v477 = vunpack.c.l.b16 %v449
        %v478 = vunpack.c.l.b16 %v450
        %v479 = vunpack.c.l.b16 %v451
        %v480 = vunpack.c.l.b16 %v452
        %v481 = vpack.c.b16 %v478, %v477
        %v482 = vpack.c.b16 %v480, %v479
        %vm483 = vcmask 261120
        %v485 = vsel %vm483, %v444, 0
        %v488 = vsel %vm483, %v481, 0
        %v491 = vsel %vm483, %v482, 0
        %493 = vmatpush.bf16.xpose.msra.mxu0 0
        %494 = vmatpush.bf16.xpose.msra.mxu0 0
        %495 = vmatpush.bf16.xpose.msra.mxu0 0
        %496 = vmatpush.bf16.xpose.msra.mxu0 0
        %497 = vmatpush.bf16.xpose.msra.mxu0 0
        %498 = vmatpush.bf16.xpose.msra.mxu0 0
        %499 = vmatpush.bf16.xpose.msra.mxu0 %v491
        %500 = vmatpush.bf16.xpose.msra.mxu0 %v488
        %501 = vmatmul.bf16.gmra.mxu0 %v485
        %v502 = vpop.f32.mrf.mxu0
        %v503 = vadd.f32 %v467, %v502
        %v504 = vpop.f32.mrf.mxu0
        %505 = vdwg.mxu0
        %v510 = vunpack.c.l.b16 %v453
        %v511 = vunpack.c.l.b16 %v454
        %v512 = vunpack.c.l.b16 %v455
        %v513 = vunpack.c.l.b16 %v456
        %v514 = vpack.c.b16 %v511, %v510
        %v515 = vpack.c.b16 %v513, %v512
        %v517 = vsel %vm483, %v446, 0
        %v520 = vsel %vm483, %v514, 0
        %v523 = vsel %vm483, %v515, 0
        %525 = vmatpush.bf16.xpose.msra.mxu0 0
        %526 = vmatpush.bf16.xpose.msra.mxu0 0
        %527 = vmatpush.bf16.xpose.msra.mxu0 0
        %528 = vmatpush.bf16.xpose.msra.mxu0 0
        %529 = vmatpush.bf16.xpose.msra.mxu0 0
        %530 = vmatpush.bf16.xpose.msra.mxu0 0
        %531 = vmatpush.bf16.xpose.msra.mxu0 %v523
        %532 = vmatpush.bf16.xpose.msra.mxu0 %v520
        %533 = vmatmul.bf16.gmra.mxu0 %v517
        %v534 = vpop.f32.mrf.mxu0
        %v535 = vadd.f32 %v468, %v534
        %v536 = vpop.f32.mrf.mxu0
        %537 = vdwg.mxu0
        %v542 = vunpack.c.l.b16 %v457
        %v543 = vunpack.c.l.b16 %v458
        %v544 = vunpack.c.l.b16 %v459
        %v545 = vunpack.c.l.b16 %v460
        %v546 = vpack.c.b16 %v543, %v542
        %v547 = vpack.c.b16 %v545, %v544
        %v549 = vsel %vm483, %v448, 0
        %v552 = vsel %vm483, %v546, 0
        %v555 = vsel %vm483, %v547, 0
        %557 = vmatpush.bf16.xpose.msra.mxu0 0
        %558 = vmatpush.bf16.xpose.msra.mxu0 0
        %559 = vmatpush.bf16.xpose.msra.mxu0 0
        %560 = vmatpush.bf16.xpose.msra.mxu0 0
        %561 = vmatpush.bf16.xpose.msra.mxu0 0
        %562 = vmatpush.bf16.xpose.msra.mxu0 0
        %563 = vmatpush.bf16.xpose.msra.mxu0 %v555
        %564 = vmatpush.bf16.xpose.msra.mxu0 %v552
        %565 = vmatmul.bf16.gmra.mxu0 %v549
        %v566 = vpop.f32.mrf.mxu0
        %v567 = vadd.f32 %v469, %v566
        %v568 = vpop.f32.mrf.mxu0
        %569 = vdwg.mxu0
        %v570 = vmul.f32 %v503, 0.35355338
        %572 = vrot.lane.b32.xlu0 %v570, 120
        %v573 = vpop.permute.xlu0 %572
        %575 = vrot.lane.b32.xlu0 %v570, 112
        %v576 = vpop.permute.xlu0 %575
        %578 = vrot.lane.b32.xlu0 %v570, 104
        %v579 = vpop.permute.xlu0 %578
        %v581 = vrot.slane %v576, 4
        %vm582 = vcmask 1047556
        %v583 = vsel %vm582, %v581, %v570
        %v584 = vrot.slane %v570, 4
        %v585 = vsel %vm582, %v576, %v584
        %v587 = vunpack.c.l.s4 1983009808
        %v588 = vunpack.c.0.s8 %v587
        %v589 = vperm.slane %v583, %v588
        %v591 = vunpack.c.l.s4 1983009808
        %v592 = vunpack.c.0.s8 %v591
        %v593 = vperm.slane %v585, %v592
        %v594 = vrot.slane %v579, 4
        %v595 = vsel %vm582, %v594, %v573
        %v596 = vrot.slane %v573, 4
        %v597 = vsel %vm582, %v579, %v596
        %v599 = vunpack.c.l.s4 1983009808
        %v600 = vunpack.c.0.s8 %v599
        %v601 = vperm.slane %v595, %v600
        %v603 = vunpack.c.l.s4 1983009808
        %v604 = vunpack.c.0.s8 %v603
        %v605 = vperm.slane %v597, %v604
        %v606 = vrot.slane %v601, 4
        %v607 = vsel %vm582, %v606, %v589
        %v608 = vrot.slane %v589, 4
        %v609 = vsel %vm582, %v601, %v608
        %v611 = vunpack.c.l.s4 1934713408
        %v612 = vunpack.c.0.s8 %v611
        %v613 = vperm.slane %v607, %v612
        %v615 = vunpack.c.l.s4 1934713408
        %v616 = vunpack.c.0.s8 %v615
        %v617 = vperm.slane %v609, %v616
        %v618 = vrot.slane %v605, 4
        %v619 = vsel %vm582, %v618, %v593
        %v620 = vrot.slane %v593, 4
        %v621 = vsel %vm582, %v605, %v620
        %v623 = vunpack.c.l.s4 1934713408
        %v624 = vunpack.c.0.s8 %v623
        %v625 = vperm.slane %v619, %v624
        %v627 = vunpack.c.l.s4 1934713408
        %v628 = vunpack.c.0.s8 %v627
        %v629 = vperm.slane %v621, %v628
        %v630 = vrot.slane %v613, 4
        %v631 = vsel %vm582, 0.0, %v630
        %v632 = vrot.slane %v617, 4
        %v633 = vsel %vm582, 0.0, %v632
        %v634 = vrot.slane %v625, 4
        %v635 = vsel %vm582, 0.0, %v634
        %v636 = vrot.slane %v629, 4
        %v637 = vsel %vm582, 0.0, %v636
        %v638 = vsel %vm582, %v632, %v613
        %v640 = vunpack.c.l.s4 1983009808
        %v641 = vunpack.c.0.s8 %v640
        %v642 = vperm.slane %v638, %v641
        %v643 = vrot.slane %v633, 4
        %v644 = vsel %vm582, %v643, %v631
        %v646 = vunpack.c.l.s4 1983009808
        %v647 = vunpack.c.0.s8 %v646
        %v648 = vperm.slane %v644, %v647
        %v649 = vsel %vm582, %v636, %v625
        %v651 = vunpack.c.l.s4 1983009808
        %v652 = vunpack.c.0.s8 %v651
        %v653 = vperm.slane %v649, %v652
        %v654 = vrot.slane %v637, 4
        %v655 = vsel %vm582, %v654, %v635
        %v657 = vunpack.c.l.s4 1983009808
        %v658 = vunpack.c.0.s8 %v657
        %v659 = vperm.slane %v655, %v658
        %v660 = vrot.slane %v648, 4
        %v661 = vsel %vm582, %v660, %v642
        %v662 = vrot.slane %v642, 4
        %v663 = vsel %vm582, %v648, %v662
        %v665 = vunpack.c.l.s4 1934713408
        %v666 = vunpack.c.0.s8 %v665
        %v667 = vperm.slane %v661, %v666
        %v669 = vunpack.c.l.s4 1934713408
        %v670 = vunpack.c.0.s8 %v669
        %v671 = vperm.slane %v663, %v670
        %v672 = vrot.slane %v659, 4
        %v673 = vsel %vm582, %v672, %v653
        %v674 = vrot.slane %v653, 4
        %v675 = vsel %vm582, %v659, %v674
        %v677 = vunpack.c.l.s4 1934713408
        %v678 = vunpack.c.0.s8 %v677
        %v679 = vperm.slane %v673, %v678
        %v681 = vunpack.c.l.s4 1934713408
        %v682 = vunpack.c.0.s8 %v681
        %v683 = vperm.slane %v675, %v682
        %v684 = vrot.slane %v679, 4
        %v685 = vsel %vm582, %v684, %v667
        %v686 = vrot.slane %v667, 4
        %v687 = vsel %vm582, %v679, %v686
        %v688 = vrot.slane %v683, 4
        %v689 = vsel %vm582, %v688, %v671
        %v690 = vrot.slane %v671, 4
        %v691 = vsel %vm582, %v683, %v690
        %v692 = vpack.c.bf16 %v685, %v685
        %v693 = vpack.c.bf16 %v687, %v687
        %v694 = vpack.c.bf16 %v689, %v689
        %v695 = vpack.c.bf16 %v691, %v691
        %697 = vrot.lane.b32.xlu0 %v535, 120
        %v698 = vpop.permute.xlu0 %697
        %700 = vrot.lane.b32.xlu0 %v535, 112
        %v701 = vpop.permute.xlu0 %700
        %703 = vrot.lane.b32.xlu0 %v535, 104
        %v704 = vpop.permute.xlu0 %703
        %v706 = vrot.slane %v701, 4
        %v707 = vsel %vm582, %v706, %v535
        %v708 = vrot.slane %v535, 4
        %v709 = vsel %vm582, %v701, %v708
        %v711 = vunpack.c.l.s4 1983009808
        %v712 = vunpack.c.0.s8 %v711
        %v713 = vperm.slane %v707, %v712
        %v715 = vunpack.c.l.s4 1983009808
        %v716 = vunpack.c.0.s8 %v715
        %v717 = vperm.slane %v709, %v716
        %v718 = vrot.slane %v704, 4
        %v719 = vsel %vm582, %v718, %v698
        %v720 = vrot.slane %v698, 4
        %v721 = vsel %vm582, %v704, %v720
        %v723 = vunpack.c.l.s4 1983009808
        %v724 = vunpack.c.0.s8 %v723
        %v725 = vperm.slane %v719, %v724
        %v727 = vunpack.c.l.s4 1983009808
        %v728 = vunpack.c.0.s8 %v727
        %v729 = vperm.slane %v721, %v728
        %v730 = vrot.slane %v725, 4
        %v731 = vsel %vm582, %v730, %v713
        %v732 = vrot.slane %v713, 4
        %v733 = vsel %vm582, %v725, %v732
        %v735 = vunpack.c.l.s4 1934713408
        %v736 = vunpack.c.0.s8 %v735
        %v737 = vperm.slane %v731, %v736
        %v739 = vunpack.c.l.s4 1934713408
        %v740 = vunpack.c.0.s8 %v739
        %v741 = vperm.slane %v733, %v740
        %v742 = vrot.slane %v729, 4
        %v743 = vsel %vm582, %v742, %v717
        %v744 = vrot.slane %v717, 4
        %v745 = vsel %vm582, %v729, %v744
        %v747 = vunpack.c.l.s4 1934713408
        %v748 = vunpack.c.0.s8 %v747
        %v749 = vperm.slane %v743, %v748
        %v751 = vunpack.c.l.s4 1934713408
        %v752 = vunpack.c.0.s8 %v751
        %v753 = vperm.slane %v745, %v752
        %v754 = vrot.slane %v737, 4
        %v755 = vsel %vm582, 0.0, %v754
        %v756 = vrot.slane %v741, 4
        %v757 = vsel %vm582, 0.0, %v756
        %v758 = vrot.slane %v749, 4
        %v759 = vsel %vm582, 0.0, %v758
        %v760 = vrot.slane %v753, 4
        %v761 = vsel %vm582, 0.0, %v760
        %v762 = vsel %vm582, %v756, %v737
        %v764 = vunpack.c.l.s4 1983009808
        %v765 = vunpack.c.0.s8 %v764
        %v766 = vperm.slane %v762, %v765
        %v767 = vrot.slane %v757, 4
        %v768 = vsel %vm582, %v767, %v755
        %v770 = vunpack.c.l.s4 1983009808
        %v771 = vunpack.c.0.s8 %v770
        %v772 = vperm.slane %v768, %v771
        %v773 = vsel %vm582, %v760, %v749
        %v775 = vunpack.c.l.s4 1983009808
        %v776 = vunpack.c.0.s8 %v775
        %v777 = vperm.slane %v773, %v776
        %v778 = vrot.slane %v761, 4
        %v779 = vsel %vm582, %v778, %v759
        %v781 = vunpack.c.l.s4 1983009808
        %v782 = vunpack.c.0.s8 %v781
        %v783 = vperm.slane %v779, %v782
        %v784 = vrot.slane %v772, 4
        %v785 = vsel %vm582, %v784, %v766
        %v786 = vrot.slane %v766, 4
        %v787 = vsel %vm582, %v772, %v786
        %v789 = vunpack.c.l.s4 1934713408
        %v790 = vunpack.c.0.s8 %v789
        %v791 = vperm.slane %v785, %v790
        %v793 = vunpack.c.l.s4 1934713408
        %v794 = vunpack.c.0.s8 %v793
        %v795 = vperm.slane %v787, %v794
        %v796 = vrot.slane %v783, 4
        %v797 = vsel %vm582, %v796, %v777
        %v798 = vrot.slane %v777, 4
        %v799 = vsel %vm582, %v783, %v798
        %v801 = vunpack.c.l.s4 1934713408
        %v802 = vunpack.c.0.s8 %v801
        %v803 = vperm.slane %v797, %v802
        %v805 = vunpack.c.l.s4 1934713408
        %v806 = vunpack.c.0.s8 %v805
        %v807 = vperm.slane %v799, %v806
        %v808 = vrot.slane %v803, 4
        %v809 = vsel %vm582, %v808, %v791
        %v810 = vrot.slane %v791, 4
        %v811 = vsel %vm582, %v803, %v810
        %v812 = vrot.slane %v807, 4
        %v813 = vsel %vm582, %v812, %v795
        %v814 = vrot.slane %v795, 4
        %v815 = vsel %vm582, %v807, %v814
        %v816 = vpack.c.bf16 %v809, %v809
        %v817 = vpack.c.bf16 %v811, %v811
        %v818 = vpack.c.bf16 %v813, %v813
        %v819 = vpack.c.bf16 %v815, %v815
        %821 = vrot.lane.b32.xlu0 %v567, 120
        %v822 = vpop.permute.xlu0 %821
        %824 = vrot.lane.b32.xlu0 %v567, 112
        %v825 = vpop.permute.xlu0 %824
        %827 = vrot.lane.b32.xlu0 %v567, 104
        %v828 = vpop.permute.xlu0 %827
        %v830 = vrot.slane %v825, 4
        %v831 = vsel %vm582, %v830, %v567
        %v832 = vrot.slane %v567, 4
        %v833 = vsel %vm582, %v825, %v832
        %v835 = vunpack.c.l.s4 1983009808
        %v836 = vunpack.c.0.s8 %v835
        %v837 = vperm.slane %v831, %v836
        %v839 = vunpack.c.l.s4 1983009808
        %v840 = vunpack.c.0.s8 %v839
        %v841 = vperm.slane %v833, %v840
        %v842 = vrot.slane %v828, 4
        %v843 = vsel %vm582, %v842, %v822
        %v844 = vrot.slane %v822, 4
        %v845 = vsel %vm582, %v828, %v844
        %v847 = vunpack.c.l.s4 1983009808
        %v848 = vunpack.c.0.s8 %v847
        %v849 = vperm.slane %v843, %v848
        %v851 = vunpack.c.l.s4 1983009808
        %v852 = vunpack.c.0.s8 %v851
        %v853 = vperm.slane %v845, %v852
        %v854 = vrot.slane %v849, 4
        %v855 = vsel %vm582, %v854, %v837
        %v856 = vrot.slane %v837, 4
        %v857 = vsel %vm582, %v849, %v856
        %v859 = vunpack.c.l.s4 1934713408
        %v860 = vunpack.c.0.s8 %v859
        %v861 = vperm.slane %v855, %v860
        %v863 = vunpack.c.l.s4 1934713408
        %v864 = vunpack.c.0.s8 %v863
        %v865 = vperm.slane %v857, %v864
        %v866 = vrot.slane %v853, 4
        %v867 = vsel %vm582, %v866, %v841
        %v868 = vrot.slane %v841, 4
        %v869 = vsel %vm582, %v853, %v868
        %v871 = vunpack.c.l.s4 1934713408
        %v872 = vunpack.c.0.s8 %v871
        %v873 = vperm.slane %v867, %v872
        %v875 = vunpack.c.l.s4 1934713408
        %v876 = vunpack.c.0.s8 %v875
        %v877 = vperm.slane %v869, %v876
        %v878 = vrot.slane %v861, 4
        %v879 = vsel %vm582, 0.0, %v878
        %v880 = vrot.slane %v865, 4
        %v881 = vsel %vm582, 0.0, %v880
        %v882 = vrot.slane %v873, 4
        %v883 = vsel %vm582, 0.0, %v882
        %v884 = vrot.slane %v877, 4
        %v885 = vsel %vm582, 0.0, %v884
        %v886 = vsel %vm582, %v880, %v861
        %v888 = vunpack.c.l.s4 1983009808
        %v889 = vunpack.c.0.s8 %v888
        %v890 = vperm.slane %v886, %v889
        %v891 = vrot.slane %v881, 4
        %v892 = vsel %vm582, %v891, %v879
        %v894 = vunpack.c.l.s4 1983009808
        %v895 = vunpack.c.0.s8 %v894
        %v896 = vperm.slane %v892, %v895
        %v897 = vsel %vm582, %v884, %v873
        %v899 = vunpack.c.l.s4 1983009808
        %v900 = vunpack.c.0.s8 %v899
        %v901 = vperm.slane %v897, %v900
        %v902 = vrot.slane %v885, 4
        %v903 = vsel %vm582, %v902, %v883
        %v905 = vunpack.c.l.s4 1983009808
        %v906 = vunpack.c.0.s8 %v905
        %v907 = vperm.slane %v903, %v906
        %v908 = vrot.slane %v896, 4
        %v909 = vsel %vm582, %v908, %v890
        %v910 = vrot.slane %v890, 4
        %v911 = vsel %vm582, %v896, %v910
        %v913 = vunpack.c.l.s4 1934713408
        %v914 = vunpack.c.0.s8 %v913
        %v915 = vperm.slane %v909, %v914
        %v917 = vunpack.c.l.s4 1934713408
        %v918 = vunpack.c.0.s8 %v917
        %v919 = vperm.slane %v911, %v918
        %v920 = vrot.slane %v907, 4
        %v921 = vsel %vm582, %v920, %v901
        %v922 = vrot.slane %v901, 4
        %v923 = vsel %vm582, %v907, %v922
        %v925 = vunpack.c.l.s4 1934713408
        %v926 = vunpack.c.0.s8 %v925
        %v927 = vperm.slane %v921, %v926
        %v929 = vunpack.c.l.s4 1934713408
        %v930 = vunpack.c.0.s8 %v929
        %v931 = vperm.slane %v923, %v930
        %v932 = vrot.slane %v927, 4
        %v933 = vsel %vm582, %v932, %v915
        %v934 = vrot.slane %v915, 4
        %v935 = vsel %vm582, %v927, %v934
        %v936 = vrot.slane %v931, 4
        %v937 = vsel %vm582, %v936, %v919
        %v938 = vrot.slane %v919, 4
        %v939 = vsel %vm582, %v931, %v938
        %v940 = vpack.c.bf16 %v933, %v933
        %v941 = vpack.c.bf16 %v935, %v935
        %v942 = vpack.c.bf16 %v937, %v937
        %v943 = vpack.c.bf16 %v939, %v939
        %vm944 = vcmask 64512
        %v946 = vsel %vm944, %v692, 0
        %v949 = vsel %vm944, %v816, 0
        %951 = vmatpush.bf16.xpose.msra.mxu0 0
        %952 = vmatpush.bf16.xpose.msra.mxu0 0
        %953 = vmatpush.bf16.xpose.msra.mxu0 0
        %954 = vmatpush.bf16.xpose.msra.mxu0 0
        %955 = vmatpush.bf16.xpose.msra.mxu0 0
        %956 = vmatpush.bf16.xpose.msra.mxu0 0
        %957 = vmatpush.bf16.xpose.msra.mxu0 0
        %958 = vmatpush.bf16.xpose.msra.mxu0 %v949
        %959 = vmatmul.bf16.gmra.mxu0 %v946
        %v960 = vpop.f32.mrf.mxu0
        %v961 = vadd.f32 0.0, %v960
        %v962 = vpop.f32.mrf.mxu0
        %963 = vdwg.mxu0
        %v965 = vsel %vm944, %v693, 0
        %v968 = vsel %vm944, %v817, 0
        %970 = vmatpush.bf16.xpose.msra.mxu0 0
        %971 = vmatpush.bf16.xpose.msra.mxu0 0
        %972 = vmatpush.bf16.xpose.msra.mxu0 0
        %973 = vmatpush.bf16.xpose.msra.mxu0 0
        %974 = vmatpush.bf16.xpose.msra.mxu0 0
        %975 = vmatpush.bf16.xpose.msra.mxu0 0
        %976 = vmatpush.bf16.xpose.msra.mxu0 0
        %977 = vmatpush.bf16.xpose.msra.mxu0 %v968
        %978 = vmatmul.bf16.gmra.mxu0 %v965
        %v979 = vpop.f32.mrf.mxu0
        %v980 = vadd.f32 0.0, %v979
        %v981 = vpop.f32.mrf.mxu0
        %982 = vdwg.mxu0
        %v984 = vsel %vm944, %v694, 0
        %v987 = vsel %vm944, %v818, 0
        %989 = vmatpush.bf16.xpose.msra.mxu0 0
        %990 = vmatpush.bf16.xpose.msra.mxu0 0
        %991 = vmatpush.bf16.xpose.msra.mxu0 0
        %992 = vmatpush.bf16.xpose.msra.mxu0 0
        %993 = vmatpush.bf16.xpose.msra.mxu0 0
        %994 = vmatpush.bf16.xpose.msra.mxu0 0
        %995 = vmatpush.bf16.xpose.msra.mxu0 0
        %996 = vmatpush.bf16.xpose.msra.mxu0 %v987
        %997 = vmatmul.bf16.gmra.mxu0 %v984
        %v998 = vpop.f32.mrf.mxu0
        %v999 = vadd.f32 0.0, %v998
        %v1000 = vpop.f32.mrf.mxu0
        %1001 = vdwg.mxu0
        %v1003 = vsel %vm944, %v695, 0
        %v1006 = vsel %vm944, %v819, 0
        %1008 = vmatpush.bf16.xpose.msra.mxu0 0
        %1009 = vmatpush.bf16.xpose.msra.mxu0 0
        %1010 = vmatpush.bf16.xpose.msra.mxu0 0
        %1011 = vmatpush.bf16.xpose.msra.mxu0 0
        %1012 = vmatpush.bf16.xpose.msra.mxu0 0
        %1013 = vmatpush.bf16.xpose.msra.mxu0 0
        %1014 = vmatpush.bf16.xpose.msra.mxu0 0
        %1015 = vmatpush.bf16.xpose.msra.mxu0 %v1006
        %1016 = vmatmul.bf16.gmra.mxu0 %v1003
        %v1017 = vpop.f32.mrf.mxu0
        %v1018 = vadd.f32 0.0, %v1017
        %v1019 = vpop.f32.mrf.mxu0
        %1020 = vdwg.mxu0
        %v1021 = vsel %vm944, %v961, -inf
        %1022 = vmax.xlane.f32.xlu0 %v1021
        %v1023 = vpop.xlane.xlu0 %1022
        %v1024 = vsel %vm944, %v980, -inf
        %1025 = vmax.xlane.f32.xlu0 %v1024
        %v1026 = vpop.xlane.xlu0 %1025
        %v1027 = vsel %vm944, %v999, -inf
        %1028 = vmax.xlane.f32.xlu0 %v1027
        %v1029 = vpop.xlane.xlu0 %1028
        %v1030 = vsel %vm944, %v1018, -inf
        %1031 = vmax.xlane.f32.xlu0 %v1030
        %v1032 = vpop.xlane.xlu0 %1031
        %v1033 = vsub.f32 %v961, %v1023
        %v1034 = vsub.f32 %v980, %v1026
        %v1035 = vsub.f32 %v999, %v1029
        %v1036 = vsub.f32 %v1018, %v1032
        %v1037 = vmul.f32 %v1033, 1.442695
        %v1038 = vpow.pop %v1037
        %v1039 = vmul.f32 %v1034, 1.442695
        %v1040 = vpow.pop %v1039
        %v1041 = vmul.f32 %v1035, 1.442695
        %v1042 = vpow.pop %v1041
        %v1043 = vmul.f32 %v1036, 1.442695
        %v1044 = vpow.pop %v1043
        %v1045 = vsel %vm944, %v1038, 0.0
        %1046 = vadd.xlane.f32.xlu0 %v1045
        %v1047 = vpop.xlane.xlu0 %1046
        %v1048 = vsel %vm944, %v1040, 0.0
        %1049 = vadd.xlane.f32.xlu0 %v1048
        %v1050 = vpop.xlane.xlu0 %1049
        %v1051 = vsel %vm944, %v1042, 0.0
        %1052 = vadd.xlane.f32.xlu0 %v1051
        %v1053 = vpop.xlane.xlu0 %1052
        %v1054 = vsel %vm944, %v1044, 0.0
        %1055 = vadd.xlane.f32.xlu0 %v1054
        %v1056 = vpop.xlane.xlu0 %1055
        %v1057 = vrcp.pop %v1047
        %v1058 = vmul.f32 %v1047, %v1057
        %v1059 = vsub.f32 1.0, %v1058
        %v1060 = vmul.f32 %v1057, %v1059
        %v1061 = vadd.f32 %v1057, %v1060
        %vm1062 = vweird.f32 %v1047
        %vm1063 = vweird.f32 %v1057
        %vm1064 = vmor %vm1062, %vm1063
        %v1065 = vsel %vm1064, %v1057, %v1061
        %v1066 = vand.u32 2147483647, %v1047
        %vm1067 = vcmp.eq.f32.partialorder %v1066, 8.507059e+37
        %v1068 = vand.u32 %v1047, 2147483648
        %v1069 = vor.u32 1.1754944e-38, %v1068
        %v1070 = vsel %vm1067, %v1069, %v1065
        %v1071 = vmul.f32 %v1038, %v1070
        %v1072 = vrcp.pop %v1050
        %v1073 = vmul.f32 %v1050, %v1072
        %v1074 = vsub.f32 1.0, %v1073
        %v1075 = vmul.f32 %v1072, %v1074
        %v1076 = vadd.f32 %v1072, %v1075
        %vm1077 = vweird.f32 %v1050
        %vm1078 = vweird.f32 %v1072
        %vm1079 = vmor %vm1077, %vm1078
        %v1080 = vsel %vm1079, %v1072, %v1076
        %v1081 = vand.u32 2147483647, %v1050
        %vm1082 = vcmp.eq.f32.partialorder %v1081, 8.507059e+37
        %v1083 = vand.u32 %v1050, 2147483648
        %v1084 = vor.u32 1.1754944e-38, %v1083
        %v1085 = vsel %vm1082, %v1084, %v1080
        %v1086 = vmul.f32 %v1040, %v1085
        %v1087 = vrcp.pop %v1053
        %v1088 = vmul.f32 %v1053, %v1087
        %v1089 = vsub.f32 1.0, %v1088
        %v1090 = vmul.f32 %v1087, %v1089
        %v1091 = vadd.f32 %v1087, %v1090
        %vm1092 = vweird.f32 %v1053
        %vm1093 = vweird.f32 %v1087
        %vm1094 = vmor %vm1092, %vm1093
        %v1095 = vsel %vm1094, %v1087, %v1091
        %v1096 = vand.u32 2147483647, %v1053
        %vm1097 = vcmp.eq.f32.partialorder %v1096, 8.507059e+37
        %v1098 = vand.u32 %v1053, 2147483648
        %v1099 = vor.u32 1.1754944e-38, %v1098
        %v1100 = vsel %vm1097, %v1099, %v1095
        %v1101 = vmul.f32 %v1042, %v1100
        %v1102 = vrcp.pop %v1056
        %v1103 = vmul.f32 %v1056, %v1102
        %v1104 = vsub.f32 1.0, %v1103
        %v1105 = vmul.f32 %v1102, %v1104
        %v1106 = vadd.f32 %v1102, %v1105
        %vm1107 = vweird.f32 %v1056
        %vm1108 = vweird.f32 %v1102
        %vm1109 = vmor %vm1107, %vm1108
        %v1110 = vsel %vm1109, %v1102, %v1106
        %v1111 = vand.u32 2147483647, %v1056
        %vm1112 = vcmp.eq.f32.partialorder %v1111, 8.507059e+37
        %v1113 = vand.u32 %v1056, 2147483648
        %v1114 = vor.u32 1.1754944e-38, %v1113
        %v1115 = vsel %vm1112, %v1114, %v1110
        %v1116 = vmul.f32 %v1044, %v1115
        %1117 = vst.msk [vmem:[%s441] sm:$0xff] %vm944, %v1071
        %1118 = vst.msk [vmem:[%s441 + $0x8] sm:$0xff] %vm944, %v1086
        %1119 = vst.msk [vmem:[%s441 + $0x10] sm:$0xff] %vm944, %v1101
        %1120 = vst.msk [vmem:[%s441 + $0x18] sm:$0xff] %vm944, %v1116
        %v1121 = vpack.c.bf16 %v1071, %v1071
        %v1122 = vpack.c.bf16 %v1086, %v1086
        %v1123 = vpack.c.bf16 %v1101, %v1101
        %v1124 = vpack.c.bf16 %v1116, %v1116
        %v1126 = vsel %vm944, %v1121, 0
        %vm1128 = vcmask 1043456
        %v1130 = vsel %vm1128, %v940, 0
        %1132 = vmatpush.bf16.msra.mxu0 0
        %1133 = vmatpush.bf16.msra.mxu0 0
        %1134 = vmatpush.bf16.msra.mxu0 0
        %1135 = vmatpush.bf16.msra.mxu0 0
        %1136 = vmatpush.bf16.msra.mxu0 0
        %1137 = vmatpush.bf16.msra.mxu0 0
        %1138 = vmatpush.bf16.msra.mxu0 0
        %1139 = vmatpush.bf16.msra.mxu0 %v1130
        %1140 = vmatmul.bf16.gmra.mxu0 %v1126
        %v1141 = vpop.f32.mrf.mxu0
        %v1142 = vadd.f32 0.0, %v1141
        %v1143 = vpop.f32.mrf.mxu0
        %1144 = vdwg.mxu0
        %v1146 = vsel %vm944, %v1122, 0
        %v1149 = vsel %vm1128, %v941, 0
        %1151 = vmatpush.bf16.msra.mxu0 0
        %1152 = vmatpush.bf16.msra.mxu0 0
        %1153 = vmatpush.bf16.msra.mxu0 0
        %1154 = vmatpush.bf16.msra.mxu0 0
        %1155 = vmatpush.bf16.msra.mxu0 0
        %1156 = vmatpush.bf16.msra.mxu0 0
        %1157 = vmatpush.bf16.msra.mxu0 0
        %1158 = vmatpush.bf16.msra.mxu0 %v1149
        %1159 = vmatmul.bf16.gmra.mxu0 %v1146
        %v1160 = vpop.f32.mrf.mxu0
        %v1161 = vadd.f32 0.0, %v1160
        %v1162 = vpop.f32.mrf.mxu0
        %1163 = vdwg.mxu0
        %v1165 = vsel %vm944, %v1123, 0
        %v1168 = vsel %vm1128, %v942, 0
        %1170 = vmatpush.bf16.msra.mxu0 0
        %1171 = vmatpush.bf16.msra.mxu0 0
        %1172 = vmatpush.bf16.msra.mxu0 0
        %1173 = vmatpush.bf16.msra.mxu0 0
        %1174 = vmatpush.bf16.msra.mxu0 0
        %1175 = vmatpush.bf16.msra.mxu0 0
        %1176 = vmatpush.bf16.msra.mxu0 0
        %1177 = vmatpush.bf16.msra.mxu0 %v1168
        %1178 = vmatmul.bf16.gmra.mxu0 %v1165
        %v1179 = vpop.f32.mrf.mxu0
        %v1180 = vadd.f32 0.0, %v1179
        %v1181 = vpop.f32.mrf.mxu0
        %1182 = vdwg.mxu0
        %v1184 = vsel %vm944, %v1124, 0
        %v1187 = vsel %vm1128, %v943, 0
        %1189 = vmatpush.bf16.msra.mxu0 0
        %1190 = vmatpush.bf16.msra.mxu0 0
        %1191 = vmatpush.bf16.msra.mxu0 0
        %1192 = vmatpush.bf16.msra.mxu0 0
        %1193 = vmatpush.bf16.msra.mxu0 0
        %1194 = vmatpush.bf16.msra.mxu0 0
        %1195 = vmatpush.bf16.msra.mxu0 0
        %1196 = vmatpush.bf16.msra.mxu0 %v1187
        %1197 = vmatmul.bf16.gmra.mxu0 %v1184
        %v1198 = vpop.f32.mrf.mxu0
        %v1199 = vadd.f32 0.0, %v1198
        %v1200 = vpop.f32.mrf.mxu0
        %1201 = vdwg.mxu0
        %v1202 = vrot.slane %v1180, 4
        %v1203 = vsel %vm582, %v1202, %v1142
        %v1204 = vrot.slane %v1142, 4
        %v1205 = vsel %vm582, %v1180, %v1204
        %v1207 = vunpack.c.l.s4 1983009808
        %v1208 = vunpack.c.0.s8 %v1207
        %v1209 = vperm.slane %v1203, %v1208
        %v1211 = vunpack.c.l.s4 1983009808
        %v1212 = vunpack.c.0.s8 %v1211
        %v1213 = vperm.slane %v1205, %v1212
        %v1214 = vrot.slane %v1199, 4
        %v1215 = vsel %vm582, %v1214, %v1161
        %v1216 = vrot.slane %v1161, 4
        %v1217 = vsel %vm582, %v1199, %v1216
        %v1219 = vunpack.c.l.s4 1983009808
        %v1220 = vunpack.c.0.s8 %v1219
        %v1221 = vperm.slane %v1215, %v1220
        %v1223 = vunpack.c.l.s4 1983009808
        %v1224 = vunpack.c.0.s8 %v1223
        %v1225 = vperm.slane %v1217, %v1224
        %v1226 = vrot.slane %v1221, 4
        %v1227 = vsel %vm582, %v1226, %v1209
        %v1228 = vrot.slane %v1209, 4
        %v1229 = vsel %vm582, %v1221, %v1228
        %v1231 = vunpack.c.l.s4 1934713408
        %v1232 = vunpack.c.0.s8 %v1231
        %v1233 = vperm.slane %v1227, %v1232
        %v1235 = vunpack.c.l.s4 1934713408
        %v1236 = vunpack.c.0.s8 %v1235
        %v1237 = vperm.slane %v1229, %v1236
        %v1238 = vrot.slane %v1225, 4
        %v1239 = vsel %vm582, %v1238, %v1213
        %v1240 = vrot.slane %v1213, 4
        %v1241 = vsel %vm582, %v1225, %v1240
        %v1243 = vunpack.c.l.s4 1934713408
        %v1244 = vunpack.c.0.s8 %v1243
        %v1245 = vperm.slane %v1239, %v1244
        %v1247 = vunpack.c.l.s4 1934713408
        %v1248 = vunpack.c.0.s8 %v1247
        %v1249 = vperm.slane %v1241, %v1248
        %v1250 = vrot.slane %v1233, 4
        %v1251 = vsel %vm582, 0.0, %v1250
        %v1252 = vrot.slane %v1237, 4
        %v1253 = vsel %vm582, 0.0, %v1252
        %v1254 = vrot.slane %v1245, 4
        %v1255 = vsel %vm582, 0.0, %v1254
        %v1256 = vrot.slane %v1249, 4
        %v1257 = vsel %vm582, 0.0, %v1256
        %v1258 = vsel %vm582, %v1252, %v1233
        %v1260 = vunpack.c.l.s4 1983009808
        %v1261 = vunpack.c.0.s8 %v1260
        %v1262 = vperm.slane %v1258, %v1261
        %v1263 = vrot.slane %v1253, 4
        %v1264 = vsel %vm582, %v1263, %v1251
        %v1266 = vunpack.c.l.s4 1983009808
        %v1267 = vunpack.c.0.s8 %v1266
        %v1268 = vperm.slane %v1264, %v1267
        %v1269 = vsel %vm582, %v1256, %v1245
        %v1271 = vunpack.c.l.s4 1983009808
        %v1272 = vunpack.c.0.s8 %v1271
        %v1273 = vperm.slane %v1269, %v1272
        %v1274 = vrot.slane %v1257, 4
        %v1275 = vsel %vm582, %v1274, %v1255
        %v1277 = vunpack.c.l.s4 1983009808
        %v1278 = vunpack.c.0.s8 %v1277
        %v1279 = vperm.slane %v1275, %v1278
        %v1280 = vrot.slane %v1268, 4
        %v1281 = vsel %vm582, %v1280, %v1262
        %v1282 = vrot.slane %v1262, 4
        %v1283 = vsel %vm582, %v1268, %v1282
        %v1285 = vunpack.c.l.s4 1934713408
        %v1286 = vunpack.c.0.s8 %v1285
        %v1287 = vperm.slane %v1281, %v1286
        %v1289 = vunpack.c.l.s4 1934713408
        %v1290 = vunpack.c.0.s8 %v1289
        %v1291 = vperm.slane %v1283, %v1290
        %v1292 = vrot.slane %v1279, 4
        %v1293 = vsel %vm582, %v1292, %v1273
        %v1294 = vrot.slane %v1273, 4
        %v1295 = vsel %vm582, %v1279, %v1294
        %v1297 = vunpack.c.l.s4 1934713408
        %v1298 = vunpack.c.0.s8 %v1297
        %v1299 = vperm.slane %v1293, %v1298
        %v1301 = vunpack.c.l.s4 1934713408
        %v1302 = vunpack.c.0.s8 %v1301
        %v1303 = vperm.slane %v1295, %v1302
        %v1304 = vrot.slane %v1299, 4
        %v1305 = vsel %vm582, %v1304, %v1287
        %v1306 = vrot.slane %v1287, 4
        %v1307 = vsel %vm582, %v1299, %v1306
        %v1308 = vrot.slane %v1303, 4
        %v1309 = vsel %vm582, %v1308, %v1291
        %v1310 = vrot.slane %v1291, 4
        %v1311 = vsel %vm582, %v1303, %v1310
        %1313 = vrot.lane.b32.xlu0 %v1307, 8
        %v1314 = vpop.permute.xlu0 %1313
        %1317 = vrot.lane.b32.xlu0 %v1309, 16
        %v1318 = vpop.permute.xlu0 %1317
        %1321 = vrot.lane.b32.xlu0 %v1311, 24
        %v1322 = vpop.permute.xlu0 %1321
        %v1324 = vsel %vm944, %v1305, %v1314
        %vm1325 = vcmask 130048
        %v1326 = vsel %vm1325, %v1324, %v1318
        %vm1327 = vcmask 195584
        %v1328 = vsel %vm1327, %v1326, %v1322
        %v1329 = vpack.c.bf16 %v1328, %v1328
        %v1330 = vld [vmem:[#allocation10] sm:$0xf]
        %v1331 = vld [vmem:[#allocation10 + $0x4] sm:$0xf]
        %v1332 = vld [vmem:[#allocation10 + $0x8] sm:$0xf]
        %v1333 = vld [vmem:[#allocation10 + $0xc] sm:$0xf]
        %v1334 = vld [vmem:[%s6] sm:$0x1]
        %v1336 = vperm.slane %v1334, 0
        %v1342 = vunpack.c.l.b16 %v1330
        %v1343 = vunpack.c.l.b16 %v1331
        %v1344 = vunpack.c.l.b16 %v1332
        %v1345 = vunpack.c.l.b16 %v1333
        %v1346 = vpack.c.b16 %v1343, %v1342
        %v1347 = vpack.c.b16 %v1345, %v1344
        %v1349 = vsel %vm483, %v1329, 0
        %v1352 = vsel %vm483, %v1346, 0
        %v1355 = vsel %vm483, %v1347, 0
        %1357 = vmatpush.bf16.xpose.msra.mxu0 0
        %1358 = vmatpush.bf16.xpose.msra.mxu0 0
        %1359 = vmatpush.bf16.xpose.msra.mxu0 0
        %1360 = vmatpush.bf16.xpose.msra.mxu0 0
        %1361 = vmatpush.bf16.xpose.msra.mxu0 0
        %1362 = vmatpush.bf16.xpose.msra.mxu0 0
        %1363 = vmatpush.bf16.xpose.msra.mxu0 %v1355
        %1364 = vmatpush.bf16.xpose.msra.mxu0 %v1352
        %1365 = vmatmul.bf16.gmra.mxu0 %v1349
        %v1366 = vpop.f32.mrf.mxu0
        %v1367 = vadd.f32 %v1336, %v1366
        %v1368 = vpop.f32.mrf.mxu0
        %1369 = vdwg.mxu0
        %1370 = vst.msk [vmem:[%s434] sm:$0xff] %vm483, %v1367
        %s1371 = sand.u32 %s203, 1
        %s1372 = scalar_lea.sflag [#allocation4], %s1371
        %s1373 = sand.u32 %s203, 1
        %s1374 = smul.addr %s1373, 8
        %s1375 = scalar_lea.vmem [#allocation11], %s1374
        %s1376 = sand.u32 %s229, 1
        %s1377 = scalar_lea.sflag [#allocation13], %s1376
        %s1378 = sand.u32 %s229, 1
        %s1379 = smul.addr %s1378, 32
        %s1380 = scalar_lea.vmem [#allocation12], %s1379
        // Predicated region
        $region69: #{tpu_custom_call.1} parent=47 // pred_check
          %p1381 = pneg %p213
        $region70: #{tpu_custom_call.1} parent=47 // pred_check_branch
          %1383 = sbr.rel (%p1381) target = $region72
        $region71: #{tpu_custom_call.1} parent=47 // pred_region
          %1385 = vsyncadd %s1372, 0
          %s1386 = smul.addr %s33, 8
          %s1387 = scalar_lea.hbm %s7, %s1386
          %s1389 = sshll.u32 %s1375, 4
          %s1390 = int_to_ptr.vmem [resolvable:$true] %s1389
          %s1391 = sshll.u32 %s1387, 4
          %s1392 = int_to_ptr.hbm [resolvable:$true] %s1391
          %1394 = dma.vmem_to_hbm [thread:$0]  %s1390, 128, %s1392, %s1372
        $region72: #{tpu_custom_call.1} parent=47 // pred_fallthru
          _
        // Predicated region
        $region73: #{tpu_custom_call.1} parent=47 // pred_check
          %p1395 = pneg %p239
        $region74: #{tpu_custom_call.1} parent=47 // pred_check_branch
          %1397 = sbr.rel (%p1395) target = $region76
        $region75: #{tpu_custom_call.1} parent=47 // pred_region
          %1399 = vsyncadd %s1377, 0
          %s1400 = smul.addr %s33, 4
          %s1401 = smul.addr %s1400, 8
          %s1402 = scalar_lea.hbm %s8, %s1401
          %s1403 = sshll.u32 %s1380, 4
          %s1404 = int_to_ptr.vmem [resolvable:$true] %s1403
          %s1405 = sshll.u32 %s1402, 4
          %s1406 = int_to_ptr.hbm [resolvable:$true] %s1405
          %1411 = dma.vmem_to_hbm [thread:$0]  %s1404, 512, %s1406, %s1377, 128, 128, 8
        $region76: #{tpu_custom_call.1} parent=47 // pred_fallthru
          _
      $region48: #{tpu_custom_call.1} parent=5 // pred_fallthru
        _
      %p1412 = scmp.le.s32.totalorder 2, %s28
      // Predicated region
      $region77: #{tpu_custom_call.1} parent=5 // pred_check
        %p1413 = pneg %p1412
      $region78: #{tpu_custom_call.1} parent=5 // pred_check_branch
        %1415 = sbr.rel (%p1413) target = $region80
      $region79: #{tpu_custom_call.1} parent=5 // pred_region
        %s1416 = ssub.s32 %s28, 2
        // Predicated region
        $region81: #{tpu_custom_call.1} parent=79 // pred_check
          %p1417 = pneg %p219
        $region82: #{tpu_custom_call.1} parent=79 // pred_check_branch
          %1419 = sbr.rel (%p1417) target = $region84
        $region83: #{tpu_custom_call.1} parent=79 // pred_region
          %s1420 = sand.u32 %s204, 1
          %s1421 = scalar_lea.sflag [#allocation4], %s1420
          %s1422 = sand.u32 %s204, 1
          %s1423 = smul.addr %s1422, 8
          %s1424 = scalar_lea.vmem [#allocation11], %s1423
          %1426 = dma.done %s1421, 128
        $region84: #{tpu_custom_call.1} parent=79 // pred_fallthru
          _
        // Predicated region
        $region85: #{tpu_custom_call.1} parent=79 // pred_check
          %p1427 = pneg %p245
        $region86: #{tpu_custom_call.1} parent=79 // pred_check_branch
          %1429 = sbr.rel (%p1427) target = $region88
        $region87: #{tpu_custom_call.1} parent=79 // pred_region
          %s1430 = sand.u32 %s230, 1
          %s1431 = scalar_lea.sflag [#allocation13], %s1430
          %s1432 = sand.u32 %s230, 1
          %s1433 = smul.addr %s1432, 32
          %s1434 = scalar_lea.vmem [#allocation12], %s1433
          %1436 = dma.done %s1431, 512
        $region88: #{tpu_custom_call.1} parent=79 // pred_fallthru
          _
      $region80: #{tpu_custom_call.1} parent=5 // pred_fallthru
        _
    $region6: #{tpu_custom_call.1} parent=1 // loop_footer
      %s32 = sadd.s32 1, %s28
    $region7: #{tpu_custom_call.1} parent=1 // loop_footer_branch
      %27 = sbr.rel target = $region3
    $region8: #{tpu_custom_call.1} parent=1 // loop_exit
      _
    %1437 = vsyncpa [#allocation3], 1
    %s1438 = scalar_lea.sflag [#allocation3], 1
    %1439 = vsyncpa %s1438, 1
    %1440 = vsyncpa [#allocation6], 1
    %s1441 = scalar_lea.sflag [#allocation6], 1
    %1442 = vsyncpa %s1441, 1
    %1443 = vsyncpa [#allocation9], 1
    %1444 = vsyncpa [#allocation4], 1
    %s1445 = scalar_lea.sflag [#allocation4], 1
    %1446 = vsyncpa %s1445, 1
    %1447 = vsyncpa [#allocation13], 1
    %s1448 = scalar_lea.sflag [#allocation13], 1
    %1449 = vsyncpa %s1448, 1

</llo_original>
